<compile_context>
chip_gen: v7x
topology: tpu7x:2x2x1
jax: 0.10.0
libtpu: 0.0.40
codegen_flags: <defaults>
</compile_context>

<pallas_src>
import functools
import math

import jax
import jax.numpy as jnp
from jax import lax
from jax.experimental import pallas as pl
from jax.experimental.pallas import tpu as pltpu

LOG_2PI = math.log(2.0 * math.pi)
LANE = 128      # T is padded to a multiple of the lane width
SUB = 8         # f32 sublane tile
BIG = 1.0e30    # finite "infinity" used for masking (avoids inf/NaN arithmetic)


def _round_up(v, m):
    return ((v + m - 1) // m) * m


def _compiler_params(dim_sem):
    return pltpu.CompilerParams(dimension_semantics=dim_sem,
                                vmem_limit_bytes=32 * 1024 * 1024)


def _num_tensorcores():
    """2 TensorCores per chip on v7x; v5e/v6e expose a single TC."""
    try:
        kind = (jax.devices()[0].device_kind or "").lower()
    except Exception:
        return 1
    return 2 if ("v7" in kind or "tpu7" in kind) else 1


def _pick_n_tile(requested, n, d, t_pad):
    """Largest row tile <= requested that keeps double-buffered blocks + temps ~<=20 MiB."""
    n_tile = _round_up(max(1, min(int(requested), max(n, 1))), SUB)
    per_row = 4 * (2 * d + 2 * t_pad)   # f32 x + log_pi blocks, double buffered
    per_row += 4 * 3 * t_pad            # f32 energy / exp / phi temporaries
    per_row += 2 * 2 * d                # bf16 x^2 and x MXU operands
    budget = 20 * 1024 * 1024
    cap = max(SUB, (budget // per_row) // SUB * SUB)
    return min(n_tile, cap)


# --------------------------------------------------------------------------------------
# Kernels
# --------------------------------------------------------------------------------------
def _energy(x2_bf, x_bf, rhs2_ref, rhs1_ref, c_ref):
    """const[t] + sum_d(-0.5*x^2/var) + sum_d(x*mu/var): two bf16 MXU dots, f32 accumulate."""
    e = lax.dot_general(x2_bf, rhs2_ref[...], (((1,), (0,)), ((), ())),
                        preferred_element_type=jnp.float32)
    e = e + lax.dot_general(x_bf, rhs1_ref[...], (((1,), (0,)), ((), ())),
                            preferred_element_type=jnp.float32)
    return c_ref[...] + e


def _min_kernel(x_ref, rhs2_ref, rhs1_ref, cg_ref, min_ref, *,
                n_tile, tiles_per_core, n_valid, t_valid):
    """Pass 1: min-accumulate the masked kl_gaussian into one resident block per core."""
    c = pl.program_id(0)
    i = pl.program_id(1)

    @pl.when(i == 0)
    def _init():
        min_ref[...] = jnp.full_like(min_ref, BIG)

    x = x_ref[...]
    x2_bf = (x * x).astype(jnp.bfloat16)
    x_bf = x.astype(jnp.bfloat16)
    kl_g = kl_g_f32 = _energy(x2_bf, x_bf, rhs2_ref, rhs1_ref, cg_ref)   # [n_tile, T_pad]

    row = (lax.broadcasted_iota(jnp.int32, (n_tile, 1), 0)
           + (c * tiles_per_core + i) * n_tile)
    col = lax.broadcasted_iota(jnp.int32, (1, kl_g_f32.shape[1]), 1)
    valid = (row < n_valid) & (col < t_valid)
    tile_min = jnp.min(jnp.where(valid, kl_g, BIG))
    min_ref[...] = jnp.minimum(min_ref[...], tile_min)


def _em_kernel(x_ref, rhs2_ref, rhs1_ref, cg_ref, logpi_ref, mix_ref,
               s2_ref, s1_ref, nt_ref, *,
               n_tile, tiles_per_core, n_valid, t_valid):
    """Pass 2: responsibilities softmax + fused M-step accumulation.

    Accumulated across the inner 'arbitrary' axis (one partial per core):
      s2 [T_pad, D] = phi^T @ x^2     s1 [T_pad, D] = phi^T @ x
      nt [8, T_pad] = column sums of phi (replicated over the 8 sublanes)
    """
    c = pl.program_id(0)
    i = pl.program_id(1)

    @pl.when(i == 0)
    def _init():
        s2_ref[...] = jnp.zeros_like(s2_ref)
        s1_ref[...] = jnp.zeros_like(s1_ref)
        nt_ref[...] = jnp.zeros_like(nt_ref)

    x = x_ref[...]
    x2_bf = (x * x).astype(jnp.bfloat16)
    x_bf = x.astype(jnp.bfloat16)
    kl_g = _energy(x2_bf, x_bf, rhs2_ref, rhs1_ref, cg_ref)

    mix = mix_ref[0, 0]
    kl = mix * kl_g + (1.0 - mix) * logpi_ref[...]

    col = lax.broadcasted_iota(jnp.int32, (1, kl.shape[1]), 1)
    row = (lax.broadcasted_iota(jnp.int32, (n_tile, 1), 0)
           + (c * tiles_per_core + i) * n_tile)
    kl = jnp.where(col < t_valid, kl, -BIG)          # padded components -> exp underflows to 0
    m = jnp.max(kl, axis=-1, keepdims=True)
    ex = jnp.exp(kl - m)
    phi = ex / jnp.sum(ex, axis=-1, keepdims=True)   # exact reciprocal (rows sum to 1)
    phi = jnp.where(row < n_valid, phi, 0.0)         # padded rows -> no mass

    nt_ref[...] += jnp.sum(phi, axis=0, keepdims=True)
    phi_bf = phi.astype(jnp.bfloat16)
    s2_ref[...] += lax.dot_general(phi_bf, x2_bf, (((0,), (0,)), ((), ())),
                                   preferred_element_type=jnp.float32)
    s1_ref[...] += lax.dot_general(phi_bf, x_bf, (((0,), (0,)), ((), ())),
                                   preferred_element_type=jnp.float32)


def _inference_kernel(x_ref, rhs2_ref, rhs1_ref, cpdf_ref, logpi_ref, out_ref, *, t_valid):
    """softmax(log_pi + log_pdf) over the valid mixture components."""
    x = x_ref[...]
    x2_bf = (x * x).astype(jnp.bfloat16)
    x_bf = x.astype(jnp.bfloat16)
    logits = logpi_ref[...] + _energy(x2_bf, x_bf, rhs2_ref, rhs1_ref, cpdf_ref)
    col = lax.broadcasted_iota(jnp.int32, (1, logits.shape[1]), 1)
    logits = jnp.where(col < t_valid, logits, -BIG)
    m = jnp.max(logits, axis=-1, keepdims=True)
    ex = jnp.exp(logits - m)
    out_ref[...] = ex / jnp.sum(ex, axis=-1, keepdims=True)


# --------------------------------------------------------------------------------------
# pallas_call wrappers
# --------------------------------------------------------------------------------------
def _split_cores(tiles, ncores):
    if not (ncores > 1 and tiles >= 2 and tiles % ncores == 0):
        ncores = 1
    return ncores, tiles // ncores


def _pass1_mins(x_pad, rhs2, rhs1, cg, *, n_tile, n_valid, t_valid, ncores):
    n_pad, d = x_pad.shape
    t_pad = rhs2.shape[1]
    tiles = n_pad // n_tile
    ncores, tpc = _split_cores(tiles, ncores)
    kern = functools.partial(_min_kernel, n_tile=n_tile, tiles_per_core=tpc,
                             n_valid=n_valid, t_valid=t_valid)
    mins = pl.pallas_call(
        kern,
        grid=(ncores, tpc),
        in_specs=[pl.BlockSpec((n_tile, d), lambda c, i: (c * tpc + i, 0)),
                  pl.BlockSpec((d, t_pad), lambda c, i: (0, 0)),
                  pl.BlockSpec((d, t_pad), lambda c, i: (0, 0)),
                  pl.BlockSpec((1, t_pad), lambda c, i: (0, 0))],
        out_specs=pl.BlockSpec((SUB, LANE), lambda c, i: (c, 0)),
        out_shape=jax.ShapeDtypeStruct((ncores * SUB, LANE), jnp.float32),
        compiler_params=_compiler_params(("parallel", "arbitrary")),
    )(x_pad, rhs2, rhs1, cg)
    return jnp.min(mins)


def _pass2_em(x_pad, rhs2, rhs1, cg, logpi_pad, mix_sm, *,
              n_tile, n_valid, t_valid, ncores):
    n_pad, d = x_pad.shape
    t_pad = rhs2.shape[1]
    tiles = n_pad // n_tile
    ncores, tpc = _split_cores(tiles, ncores)
    kern = functools.partial(_em_kernel, n_tile=n_tile, tiles_per_core=tpc,
                             n_valid=n_valid, t_valid=t_valid)
    s2, s1, nt = pl.pallas_call(
        kern,
        grid=(ncores, tpc),
        in_specs=[pl.BlockSpec((n_tile, d), lambda c, i: (c * tpc + i, 0)),
                  pl.BlockSpec((d, t_pad), lambda c, i: (0, 0)),
                  pl.BlockSpec((d, t_pad), lambda c, i: (0, 0)),
                  pl.BlockSpec((1, t_pad), lambda c, i: (0, 0)),
                  pl.BlockSpec((n_tile, t_pad), lambda c, i: (c * tpc + i, 0)),
                  pl.BlockSpec(memory_space=pltpu.MemorySpace.SMEM)],
        out_specs=(pl.BlockSpec((t_pad, d), lambda c, i: (c, 0)),
                   pl.BlockSpec((t_pad, d), lambda c, i: (c, 0)),
                   pl.BlockSpec((SUB, t_pad), lambda c, i: (c, 0))),
        out_shape=(jax.ShapeDtypeStruct((ncores * t_pad, d), jnp.float32),
                   jax.ShapeDtypeStruct((ncores * t_pad, d), jnp.float32),
                   jax.ShapeDtypeStruct((ncores * SUB, t_pad), jnp.float32)),
        compiler_params=_compiler_params(("parallel", "arbitrary")),
    )(x_pad, rhs2, rhs1, cg, logpi_pad, mix_sm)
    s2 = s2.reshape(ncores, t_pad, d).sum(axis=0)     # combine per-core partials
    s1 = s1.reshape(ncores, t_pad, d).sum(axis=0)
    nt = nt.reshape(ncores, SUB, t_pad)[:, 0, :].sum(axis=0)
    return s2, s1, nt


def _inference(x_pad, rhs2, rhs1, cpdf, logpi_pad, *, n_tile, t_valid):
    n_pad, d = x_pad.shape
    t_pad = rhs2.shape[1]
    tiles = n_pad // n_tile
    kern = functools.partial(_inference_kernel, t_valid=t_valid)
    return pl.pallas_call(
        kern,
        grid=(tiles,),
        in_specs=[pl.BlockSpec((n_tile, d), lambda i: (i, 0)),
                  pl.BlockSpec((d, t_pad), lambda i: (0, 0)),
                  pl.BlockSpec((d, t_pad), lambda i: (0, 0)),
                  pl.BlockSpec((1, t_pad), lambda i: (0, 0)),
                  pl.BlockSpec((n_tile, t_pad), lambda i: (i, 0))],
        out_specs=pl.BlockSpec((n_tile, t_pad), lambda i: (i, 0)),
        out_shape=jax.ShapeDtypeStruct((n_pad, t_pad), jnp.float32),
        compiler_params=_compiler_params(("parallel",)),
    )(x_pad, rhs2, rhs1, cpdf, logpi_pad)


# --------------------------------------------------------------------------------------
# O(T*D) glue (all inside the same jit)
# --------------------------------------------------------------------------------------
def _gaussian_consts(mu_p, rho_p):
    d = mu_p.shape[1]
    inv_var = jnp.exp(-2.0 * rho_p)                              # sigma = exp(rho)
    rhs2 = (-0.5 * inv_var).T.astype(jnp.bfloat16)               # [D, T_pad] multiplies x^2
    rhs1 = (mu_p * inv_var).T.astype(jnp.bfloat16)               # [D, T_pad] multiplies x
    quad = jnp.sum(mu_p * mu_p * inv_var, axis=-1)
    cg = (0.5 * d - 0.5 * quad)[None, :]                         # log_pdf + entropy constant
    cpdf = (-0.5 * d * LOG_2PI - jnp.sum(rho_p, axis=-1) - 0.5 * quad)[None, :]
    return rhs2, rhs1, cg, cpdf


def _sample_log_pi(key, g1, g2, n, trunc, n_pad, t_pad):
    # TODO(synk): reference uses scipy.stats.beta.rvs on the host; replaced with jax.random.beta.
    beta_s = jax.random.beta(key, g1, g2, shape=(n, trunc)).astype(jnp.float32)
    ones = jnp.ones((n, 1), jnp.float32)
    pi = (jnp.concatenate([beta_s, ones], axis=-1)
          * jnp.concatenate([ones, jnp.cumprod(1.0 - beta_s, axis=-1)], axis=-1))[:, :-1]
    log_pi = jnp.log(jnp.maximum(pi, 1e-30))
    min_pi = jnp.min(log_pi)                                     # global min of log_pi (glue)
    logpi_pad = jnp.zeros((n_pad, t_pad), jnp.float32).at[:n, :trunc].set(log_pi)
    return logpi_pad, min_pi


def _em_epoch(x_pad, mu_p, rho_p, nt_old_vec, logpi_pad, min_pi, *,
              eta, n_valid, t_valid, n_tile, ncores):
    rhs2, rhs1, cg, _ = _gaussian_consts(mu_p, rho_p)

    # Exact global min over the whole batch (two-pass structure keeps reference numerics).
    min_g = _pass1_mins(x_pad, rhs2, rhs1, cg, n_tile=n_tile,
                        n_valid=n_valid, t_valid=t_valid, ncores=ncores)
    den = min_g + min_pi
    den = jnp.where(jnp.abs(den) > 1e-12, den,
                    jnp.where(den >= 0.0, 1e-12, -1e-12))        # guard near-zero denominator
    mix = min_pi / den
    mix_sm = jnp.reshape(mix, (1, 1)).astype(jnp.float32)

    s2, s1, nt_new_vec = _pass2_em(x_pad, rhs2, rhs1, cg, logpi_pad, mix_sm,
                                   n_tile=n_tile, n_valid=n_valid,
                                   t_valid=t_valid, ncores=ncores)

    # M-step finalisation (update_mean / update_variance).
    n_t_old = jnp.maximum(nt_old_vec, 1e-6)[:, None]
    n_t_new = jnp.maximum(nt_new_vec, 1e-6)[:, None]
    w = n_t_old / (n_t_new + n_t_old)
    mu_new = w * mu_p + (1.0 - w) * (s1 / n_t_new)
    var_new = (s2 - 2.0 * mu_new * s1 + mu_new * mu_new * nt_new_vec[:, None]) / n_t_new
    sig_new = jnp.sqrt(jnp.maximum(var_new, 0.0))
    rho_new = jnp.log(w * jnp.exp(rho_p) + (1.0 - w) * sig_new)

    # Gamma update uses the *old* phi statistics (matches the reference ordering).
    p_bar = nt_old_vec / float(n_valid)
    g1 = 1.0 + p_bar[:t_valid]
    g2 = eta + (jnp.sum(p_bar) - jnp.cumsum(p_bar))[:t_valid]
    return mu_new, rho_new, nt_new_vec, g1, g2


@functools.partial(jax.jit, static_argnames=("trunc", "eta", "epochs", "n_tile"))
def dp_cluster_em_forward(x, mu0, rho0, key, *, trunc, eta, epochs, n_tile=1024):
    n, d = x.shape
    t_pad = _round_up(trunc, LANE)
    n_tile = _pick_n_tile(n_tile, n, d, t_pad)
    n_pad = _round_up(n, n_tile)
    ncores = _num_tensorcores()                       # 2-way core split only on v7x

    x_pad = jnp.zeros((n_pad, d), jnp.float32).at[:n].set(x.astype(jnp.float32))
    mu_p = jnp.zeros((t_pad, d), jnp.float32).at[:trunc].set(mu0.astype(jnp.float32))
    rho_p = jnp.zeros((t_pad, d), jnp.float32).at[:trunc].set(rho0.astype(jnp.float32))

    # Only phi's column sums are carried across epochs (all the M-step / gamma update need);
    # initial phi = 1/T.  TODO(synk): assumes batch_size == x.shape[0] (as in reference use).
    nt0 = jnp.where(jnp.arange(t_pad) < trunc,
                    float(n) / float(trunc), 0.0).astype(jnp.float32)
    g1_0 = jnp.ones((trunc,), jnp.float32)
    g2_0 = jnp.full((trunc,), float(eta), jnp.float32)

    def body(_, carry):
        mu_c, rho_c, nt_c, g1_c, g2_c, key_c = carry
        key_c, sub = jax.random.split(key_c)
        logpi_pad, min_pi = _sample_log_pi(sub, g1_c, g2_c, n, trunc, n_pad, t_pad)
        mu_c, rho_c, nt_c, g1_c, g2_c = _em_epoch(
            x_pad, mu_c, rho_c, nt_c, logpi_pad, min_pi,
            eta=float(eta), n_valid=n, t_valid=trunc, n_tile=n_tile, ncores=ncores)
        return (mu_c, rho_c, nt_c, g1_c, g2_c, key_c)

    mu_p, rho_p, _, g1, g2, key = lax.fori_loop(
        0, epochs, body, (mu_p, rho_p, nt0, g1_0, g2_0, key))

    key, sub = jax.random.split(key)
    logpi_pad, _ = _sample_log_pi(sub, g1, g2, n, trunc, n_pad, t_pad)
    rhs2, rhs1, _, cpdf = _gaussian_consts(mu_p, rho_p)
    probs = _inference(x_pad, rhs2, rhs1, cpdf, logpi_pad, n_tile=n_tile, t_valid=trunc)
    return probs[:n, :trunc]


class DPClusterEM:
    """JAX/Pallas port of DP_Cluster_EM: `epoch` EM updates + soft-assignment inference."""

    def __init__(self, trunc, eta, batch_size, epoch, dim=256, *, key):
        self.T = int(trunc)
        self.eta = float(eta)
        self.batch_size = int(batch_size)
        self.epoch = int(epoch)
        self.dim = int(dim)
        k_mu, k_rho = jax.random.split(key)
        # Matches the module's __init__ distributions (uniform(-0.5,0.5) / uniform(-4,-3)).
        self.mu = jax.random.uniform(k_mu, (trunc, dim), jnp.float32, -0.5, 0.5)
        self.rho = jax.random.uniform(k_rho, (trunc, dim), jnp.float32, -4.0, -3.0)

    def __call__(self, x, key, n_tile=1024):
        return dp_cluster_em_forward(x, self.mu, self.rho, key,
                                     trunc=self.T, eta=self.eta,
                                     epochs=self.epoch, n_tile=n_tile)


if __name__ == "__main__":
    TRUNC, ETA, N, EPOCH, DIM = 8, 1.0, 64, 2, 128
    root = jax.random.PRNGKey(0)
    k_param, k_x, k_fwd = jax.random.split(root, 3)

    model = DPClusterEM(TRUNC, ETA, batch_size=N, epoch=EPOCH, dim=DIM, key=k_param)
    x = jax.random.normal(k_x, (N, DIM), jnp.float32)          # x: [N, D]

    # n_tile=16 -> 4 row tiles -> exercises the tiled grid + accumulating reductions.
    out = model(x, k_fwd, n_tile=16)                            # softmax logits: [N, T]
    out = jax.block_until_ready(out)
    assert out.shape == (N, TRUNC)
    assert bool(jnp.all(jnp.isfinite(out)))
    print("KERNEL_OK")
</pallas_src>

<mosaic_0001>
module attributes {stable_mosaic.version = 11 : i64} {
  func.func @_min_kernel(%arg0: i32, %arg1: i32, %arg2: memref<16x128xf32, #tpu.memory_space<vmem>>, %arg3: memref<128x128xbf16, #tpu.memory_space<vmem>>, %arg4: memref<128x128xbf16, #tpu.memory_space<vmem>>, %arg5: memref<1x128xf32, #tpu.memory_space<vmem>>, %arg6: memref<8x128xf32, #tpu.memory_space<vmem>>) attributes {dimension_semantics = [#tpu.dimension_semantics<parallel>, #tpu.dimension_semantics<arbitrary>], iteration_bounds = array<i64: 1, 4>, scalar_prefetch = 0 : i64, scratch_operands = 0 : i64, tpu.core_type = #tpu.core_type<tc>, window_params = [{transform_indices = @transform_0, window_bounds = array<i64: 16, 128>}, {pipeline_mode = #tpu.pipeline_mode<synchronous>, transform_indices = @transform_1, window_bounds = array<i64: 128, 128>}, {pipeline_mode = #tpu.pipeline_mode<synchronous>, transform_indices = @transform_2, window_bounds = array<i64: 128, 128>}, {pipeline_mode = #tpu.pipeline_mode<synchronous>, transform_indices = @transform_3, window_bounds = array<i64: 1, 128>}, {transform_indices = @transform_4, window_bounds = array<i64: 8, 128>}]} {
    %c0_i32 = arith.constant 0 : i32
    %0 = arith.cmpi eq, %arg1, %c0_i32 : i32
    %1 = arith.extui %0 : i1 to i32
    %c0_i32_0 = arith.constant 0 : i32
    %2 = arith.cmpi ne, %1, %c0_i32_0 : i32
    scf.if %2 {
      %cst_15 = arith.constant 1.000000e+30 : f32
      %39 = vector.broadcast %cst_15 : f32 to vector<8x128xf32>
      %c0_16 = arith.constant 0 : index
      %c0_17 = arith.constant 0 : index
      %40 = vector.load %arg6[%c0_16, %c0_17] : memref<8x128xf32, #tpu.memory_space<vmem>>, vector<8x128xf32>
      tpu.vector_store %arg6[%c0_16, %c0_17], %39 {strides = array<i32>} : memref<8x128xf32, #tpu.memory_space<vmem>>, vector<8x128xf32>,
    } else {
    }
    %c0 = arith.constant 0 : index
    %c0_1 = arith.constant 0 : index
    %3 = vector.load %arg2[%c0, %c0_1] : memref<16x128xf32, #tpu.memory_space<vmem>>, vector<16x128xf32>
    %4 = arith.mulf %3, %3 : vector<16x128xf32>
    %5 = arith.truncf %4 : vector<16x128xf32> to vector<16x128xbf16>
    %6 = arith.truncf %3 : vector<16x128xf32> to vector<16x128xbf16>
    %c0_2 = arith.constant 0 : index
    %c0_3 = arith.constant 0 : index
    %7 = vector.load %arg3[%c0_2, %c0_3] : memref<128x128xbf16, #tpu.memory_space<vmem>>, vector<128x128xbf16>
    %cst = arith.constant dense<0.000000e+00> : vector<16x128xf32>
    %8 = tpu.matmul %5, %7, %cst {dimension_numbers = #tpu.dot_dimension_numbers<[1], [0], [0], [1], [0, 0, 1, 1], [], []>} : vector<16x128xbf16>, vector<128x128xbf16>, vector<16x128xf32> -> vector<16x128xf32>
    %c0_4 = arith.constant 0 : index
    %c0_5 = arith.constant 0 : index
    %9 = vector.load %arg4[%c0_4, %c0_5] : memref<128x128xbf16, #tpu.memory_space<vmem>>, vector<128x128xbf16>
    %cst_6 = arith.constant dense<0.000000e+00> : vector<16x128xf32>
    %10 = tpu.matmul %6, %9, %cst_6 {dimension_numbers = #tpu.dot_dimension_numbers<[1], [0], [0], [1], [0, 0, 1, 1], [], []>} : vector<16x128xbf16>, vector<128x128xbf16>, vector<16x128xf32> -> vector<16x128xf32>
    %11 = arith.addf %8, %10 : vector<16x128xf32>
    %c0_7 = arith.constant 0 : index
    %c0_8 = arith.constant 0 : index
    %12 = vector.load %arg5[%c0_7, %c0_8] : memref<1x128xf32, #tpu.memory_space<vmem>>, vector<1x128xf32>
    %13 = vector.broadcast %12 : vector<1x128xf32> to vector<16x128xf32>
    %14 = arith.addf %13, %11 : vector<16x128xf32>
    %15 = tpu.iota {dimensions = array<i32: 0>} : vector<16x1xi32>
    %c4_i32 = arith.constant 4 : i32
    %16 = arith.muli %arg0, %c4_i32 : i32
    %17 = arith.addi %16, %arg1 : i32
    %c16_i32 = arith.constant 16 : i32
    %18 = arith.muli %17, %c16_i32 : i32
    %19 = vector.broadcast %18 : i32 to vector<16x1xi32>
    %20 = arith.addi %15, %19 : vector<16x1xi32>
    %21 = tpu.iota {dimensions = array<i32: 1>} : vector<1x128xi32>
    %c64_i32 = arith.constant 64 : i32
    %22 = vector.broadcast %c64_i32 : i32 to vector<16x1xi32>
    %23 = arith.cmpi slt, %20, %22 : vector<16x1xi32>
    %c8_i32 = arith.constant 8 : i32
    %24 = vector.broadcast %c8_i32 : i32 to vector<1x128xi32>
    %25 = arith.cmpi slt, %21, %24 : vector<1x128xi32>
    %26 = vector.broadcast %23 : vector<16x1xi1> to vector<16x128xi1>
    %27 = vector.broadcast %25 : vector<1x128xi1> to vector<16x128xi1>
    %28 = arith.andi %26, %27 : vector<16x128xi1>
    %cst_9 = arith.constant 1.000000e+30 : f32
    %29 = vector.broadcast %cst_9 : f32 to vector<16x128xf32>
    %30 = arith.select %28, %14, %29 : vector<16x128xi1>, vector<16x128xf32>
    %31 = vector.shape_cast %30 : vector<16x128xf32> to vector<1x16x128xf32>
    %cst_10 = arith.constant dense<0x7F800000> : vector<1xf32>
    %32 = vector.multi_reduction <minimumf>, %31, %cst_10 [1, 2] : vector<1x16x128xf32> to vector<1xf32>
    %33 = vector.shape_cast %32 : vector<1xf32> to vector<1x1x1xf32>
    %34 = vector.extract %33[0, 0, 0] : f32 from vector<1x1x1xf32>
    %c0_11 = arith.constant 0 : index
    %c0_12 = arith.constant 0 : index
    %35 = vector.load %arg6[%c0_11, %c0_12] : memref<8x128xf32, #tpu.memory_space<vmem>>, vector<8x128xf32>
    %36 = vector.broadcast %34 : f32 to vector<8x128xf32>
    %37 = arith.minimumf %35, %36 : vector<8x128xf32>
    %c0_13 = arith.constant 0 : index
    %c0_14 = arith.constant 0 : index
    %38 = vector.load %arg6[%c0_13, %c0_14] : memref<8x128xf32, #tpu.memory_space<vmem>>, vector<8x128xf32>
    tpu.vector_store %arg6[%c0_13, %c0_14], %37 {strides = array<i32>} : memref<8x128xf32, #tpu.memory_space<vmem>>, vector<8x128xf32>,
    return
  }
  func.func @transform_0(%arg0: i32, %arg1: i32) -> (i32, i32) {
    %c4_i32 = arith.constant 4 : i32
    %0 = arith.muli %arg0, %c4_i32 : i32
    %1 = arith.addi %0, %arg1 : i32
    %c0_i32 = arith.constant 0 : i32
    %c0_i32_0 = arith.constant 0 : i32
    return %1, %c0_i32 : i32, i32
  }
  func.func @transform_1(%arg0: i32, %arg1: i32) -> (i32, i32) {
    %c0_i32 = arith.constant 0 : i32
    %c0_i32_0 = arith.constant 0 : i32
    %c0_i32_1 = arith.constant 0 : i32
    return %c0_i32, %c0_i32_0 : i32, i32
  }
  func.func @transform_2(%arg0: i32, %arg1: i32) -> (i32, i32) {
    %c0_i32 = arith.constant 0 : i32
    %c0_i32_0 = arith.constant 0 : i32
    %c0_i32_1 = arith.constant 0 : i32
    return %c0_i32, %c0_i32_0 : i32, i32
  }
  func.func @transform_3(%arg0: i32, %arg1: i32) -> (i32, i32) {
    %c0_i32 = arith.constant 0 : i32
    %c0_i32_0 = arith.constant 0 : i32
    %c0_i32_1 = arith.constant 0 : i32
    return %c0_i32, %c0_i32_0 : i32, i32
  }
  func.func @transform_4(%arg0: i32, %arg1: i32) -> (i32, i32) {
    %c0_i32 = arith.constant 0 : i32
    %c0_i32_0 = arith.constant 0 : i32
    return %arg0, %c0_i32 : i32, i32
  }
}

module attributes {stable_mosaic.version = 11 : i64} {
  func.func @_em_kernel(%arg0: i32, %arg1: i32, %arg2: memref<16x128xf32, #tpu.memory_space<vmem>>, %arg3: memref<128x128xbf16, #tpu.memory_space<vmem>>, %arg4: memref<128x128xbf16, #tpu.memory_space<vmem>>, %arg5: memref<1x128xf32, #tpu.memory_space<vmem>>, %arg6: memref<16x128xf32, #tpu.memory_space<vmem>>, %arg7: memref<1x1xf32, #tpu.memory_space<smem>>, %arg8: memref<128x128xf32, #tpu.memory_space<vmem>>, %arg9: memref<128x128xf32, #tpu.memory_space<vmem>>, %arg10: memref<8x128xf32, #tpu.memory_space<vmem>>) attributes {dimension_semantics = [#tpu.dimension_semantics<parallel>, #tpu.dimension_semantics<arbitrary>], iteration_bounds = array<i64: 1, 4>, scalar_prefetch = 0 : i64, scratch_operands = 0 : i64, tpu.core_type = #tpu.core_type<tc>, window_params = [{transform_indices = @transform_0, window_bounds = array<i64: 16, 128>}, {pipeline_mode = #tpu.pipeline_mode<synchronous>, transform_indices = @transform_1, window_bounds = array<i64: 128, 128>}, {pipeline_mode = #tpu.pipeline_mode<synchronous>, transform_indices = @transform_2, window_bounds = array<i64: 128, 128>}, {pipeline_mode = #tpu.pipeline_mode<synchronous>, transform_indices = @transform_3, window_bounds = array<i64: 1, 128>}, {transform_indices = @transform_4, window_bounds = array<i64: 16, 128>}, {transform_indices = @transform_5, window_bounds = array<i64: 1, 1>}, {transform_indices = @transform_6, window_bounds = array<i64: 128, 128>}, {transform_indices = @transform_7, window_bounds = array<i64: 128, 128>}, {transform_indices = @transform_8, window_bounds = array<i64: 8, 128>}]} {
    %c0_i32 = arith.constant 0 : i32
    %0 = arith.cmpi eq, %arg1, %c0_i32 : i32
    %1 = arith.extui %0 : i1 to i32
    %c0_i32_0 = arith.constant 0 : i32
    %2 = arith.cmpi ne, %1, %c0_i32_0 : i32
    scf.if %2 {
      %cst_33 = arith.constant 0.000000e+00 : f32
      %66 = vector.broadcast %cst_33 : f32 to vector<128x128xf32>
      %c0_34 = arith.constant 0 : index
      %c0_35 = arith.constant 0 : index
      %67 = vector.load %arg8[%c0_34, %c0_35] : memref<128x128xf32, #tpu.memory_space<vmem>>, vector<128x128xf32>
      tpu.vector_store %arg8[%c0_34, %c0_35], %66 {strides = array<i32>} : memref<128x128xf32, #tpu.memory_space<vmem>>, vector<128x128xf32>,
      %cst_36 = arith.constant 0.000000e+00 : f32
      %68 = vector.broadcast %cst_36 : f32 to vector<128x128xf32>
      %c0_37 = arith.constant 0 : index
      %c0_38 = arith.constant 0 : index
      %69 = vector.load %arg9[%c0_37, %c0_38] : memref<128x128xf32, #tpu.memory_space<vmem>>, vector<128x128xf32>
      tpu.vector_store %arg9[%c0_37, %c0_38], %68 {strides = array<i32>} : memref<128x128xf32, #tpu.memory_space<vmem>>, vector<128x128xf32>,
      %cst_39 = arith.constant 0.000000e+00 : f32
      %70 = vector.broadcast %cst_39 : f32 to vector<8x128xf32>
      %c0_40 = arith.constant 0 : index
      %c0_41 = arith.constant 0 : index
      %71 = vector.load %arg10[%c0_40, %c0_41] : memref<8x128xf32, #tpu.memory_space<vmem>>, vector<8x128xf32>
      tpu.vector_store %arg10[%c0_40, %c0_41], %70 {strides = array<i32>} : memref<8x128xf32, #tpu.memory_space<vmem>>, vector<8x128xf32>,
    } else {
    }
    %c0 = arith.constant 0 : index
    %c0_1 = arith.constant 0 : index
    %3 = vector.load %arg2[%c0, %c0_1] : memref<16x128xf32, #tpu.memory_space<vmem>>, vector<16x128xf32>
    %4 = arith.mulf %3, %3 : vector<16x128xf32>
    %5 = arith.truncf %4 : vector<16x128xf32> to vector<16x128xbf16>
    %6 = arith.truncf %3 : vector<16x128xf32> to vector<16x128xbf16>
    %c0_2 = arith.constant 0 : index
    %c0_3 = arith.constant 0 : index
    %7 = vector.load %arg3[%c0_2, %c0_3] : memref<128x128xbf16, #tpu.memory_space<vmem>>, vector<128x128xbf16>
    %cst = arith.constant dense<0.000000e+00> : vector<16x128xf32>
    %8 = tpu.matmul %5, %7, %cst {dimension_numbers = #tpu.dot_dimension_numbers<[1], [0], [0], [1], [0, 0, 1, 1], [], []>} : vector<16x128xbf16>, vector<128x128xbf16>, vector<16x128xf32> -> vector<16x128xf32>
    %c0_4 = arith.constant 0 : index
    %c0_5 = arith.constant 0 : index
    %9 = vector.load %arg4[%c0_4, %c0_5] : memref<128x128xbf16, #tpu.memory_space<vmem>>, vector<128x128xbf16>
    %cst_6 = arith.constant dense<0.000000e+00> : vector<16x128xf32>
    %10 = tpu.matmul %6, %9, %cst_6 {dimension_numbers = #tpu.dot_dimension_numbers<[1], [0], [0], [1], [0, 0, 1, 1], [], []>} : vector<16x128xbf16>, vector<128x128xbf16>, vector<16x128xf32> -> vector<16x128xf32>
    %11 = arith.addf %8, %10 : vector<16x128xf32>
    %c0_7 = arith.constant 0 : index
    %c0_8 = arith.constant 0 : index
    %12 = vector.load %arg5[%c0_7, %c0_8] : memref<1x128xf32, #tpu.memory_space<vmem>>, vector<1x128xf32>
    %13 = vector.broadcast %12 : vector<1x128xf32> to vector<16x128xf32>
    %14 = arith.addf %13, %11 : vector<16x128xf32>
    %c0_9 = arith.constant 0 : index
    %c0_10 = arith.constant 0 : index
    %15 = memref.load %arg7[%c0_9, %c0_10] : memref<1x1xf32, #tpu.memory_space<smem>>
    %16 = vector.broadcast %15 : f32 to vector<16x128xf32>
    %17 = arith.mulf %16, %14 : vector<16x128xf32>
    %cst_11 = arith.constant 1.000000e+00 : f32
    %18 = arith.subf %cst_11, %15 : f32
    %c0_12 = arith.constant 0 : index
    %c0_13 = arith.constant 0 : index
    %19 = vector.load %arg6[%c0_12, %c0_13] : memref<16x128xf32, #tpu.memory_space<vmem>>, vector<16x128xf32>
    %20 = vector.broadcast %18 : f32 to vector<16x128xf32>
    %21 = arith.mulf %20, %19 : vector<16x128xf32>
    %22 = arith.addf %17, %21 : vector<16x128xf32>
    %23 = tpu.iota {dimensions = array<i32: 1>} : vector<1x128xi32>
    %24 = tpu.iota {dimensions = array<i32: 0>} : vector<16x1xi32>
    %c4_i32 = arith.constant 4 : i32
    %25 = arith.muli %arg0, %c4_i32 : i32
    %26 = arith.addi %25, %arg1 : i32
    %c16_i32 = arith.constant 16 : i32
    %27 = arith.muli %26, %c16_i32 : i32
    %28 = vector.broadcast %27 : i32 to vector<16x1xi32>
    %29 = arith.addi %24, %28 : vector<16x1xi32>
    %c8_i32 = arith.constant 8 : i32
    %30 = vector.broadcast %c8_i32 : i32 to vector<1x128xi32>
    %31 = arith.cmpi slt, %23, %30 : vector<1x128xi32>
    %cst_14 = arith.constant -1.000000e+30 : f32
    %32 = vector.shape_cast %31 : vector<1x128xi1> to vector<1x128xi1>
    %33 = vector.broadcast %32 : vector<1x128xi1> to vector<16x128xi1>
    %34 = vector.broadcast %cst_14 : f32 to vector<16x128xf32>
    %35 = arith.select %33, %22, %34 : vector<16x128xi1>, vector<16x128xf32>
    %cst_15 = arith.constant dense<0xFF800000> : vector<16xf32>
    %36 = vector.multi_reduction <maximumf>, %35, %cst_15 [1] : vector<16x128xf32> to vector<16xf32>
    %37 = vector.shape_cast %36 : vector<16xf32> to vector<16x1xf32>
    %38 = vector.broadcast %37 : vector<16x1xf32> to vector<16x128xf32>
    %39 = arith.subf %35, %38 : vector<16x128xf32>
    %40 = math.exp %39 : vector<16x128xf32>
    %cst_16 = arith.constant dense<0.000000e+00> : vector<16xf32>
    %41 = vector.multi_reduction <add>, %40, %cst_16 [1] : vector<16x128xf32> to vector<16xf32>
    %42 = vector.shape_cast %41 : vector<16xf32> to vector<16x1xf32>
    %43 = vector.broadcast %42 : vector<16x1xf32> to vector<16x128xf32>
    %44 = arith.divf %40, %43 : vector<16x128xf32>
    %c64_i32 = arith.constant 64 : i32
    %45 = vector.broadcast %c64_i32 : i32 to vector<16x1xi32>
    %46 = arith.cmpi slt, %29, %45 : vector<16x1xi32>
    %cst_17 = arith.constant 0.000000e+00 : f32
    %47 = vector.shape_cast %46 : vector<16x1xi1> to vector<16x1xi1>
    %48 = vector.broadcast %47 : vector<16x1xi1> to vector<16x128xi1>
    %49 = vector.broadcast %cst_17 : f32 to vector<16x128xf32>
    %50 = arith.select %48, %44, %49 : vector<16x128xi1>, vector<16x128xf32>
    %c0_18 = arith.constant 0 : index
    %c0_19 = arith.constant 0 : index
    %51 = vector.load %arg10[%c0_18, %c0_19] : memref<8x128xf32, #tpu.memory_space<vmem>>, vector<8x128xf32>
    %cst_20 = arith.constant dense<0.000000e+00> : vector<128xf32>
    %52 = vector.multi_reduction <add>, %50, %cst_20 [0] : vector<16x128xf32> to vector<128xf32>
    %53 = vector.shape_cast %52 : vector<128xf32> to vector<1x128xf32>
    %54 = vector.broadcast %53 : vector<1x128xf32> to vector<8x128xf32>
    %55 = arith.addf %51, %54 : vector<8x128xf32>
    %c0_21 = arith.constant 0 : index
    %c0_22 = arith.constant 0 : index
    %56 = vector.load %arg10[%c0_21, %c0_22] : memref<8x128xf32, #tpu.memory_space<vmem>>, vector<8x128xf32>
    tpu.vector_store %arg10[%c0_21, %c0_22], %55 {strides = array<i32>} : memref<8x128xf32, #tpu.memory_space<vmem>>, vector<8x128xf32>,
    %57 = arith.truncf %50 : vector<16x128xf32> to vector<16x128xbf16>
    %c0_23 = arith.constant 0 : index
    %c0_24 = arith.constant 0 : index
    %58 = vector.load %arg8[%c0_23, %c0_24] : memref<128x128xf32, #tpu.memory_space<vmem>>, vector<128x128xf32>
    %cst_25 = arith.constant dense<0.000000e+00> : vector<128x128xf32>
    %59 = tpu.matmul %57, %5, %cst_25 {dimension_numbers = #tpu.dot_dimension_numbers<[0], [0], [1], [1], [0, 1, 1, 1], [], []>} : vector<16x128xbf16>, vector<16x128xbf16>, vector<128x128xf32> -> vector<128x128xf32>
    %60 = arith.addf %58, %59 : vector<128x128xf32>
    %c0_26 = arith.constant 0 : index
    %c0_27 = arith.constant 0 : index
    %61 = vector.load %arg8[%c0_26, %c0_27] : memref<128x128xf32, #tpu.memory_space<vmem>>, vector<128x128xf32>
    tpu.vector_store %arg8[%c0_26, %c0_27], %60 {strides = array<i32>} : memref<128x128xf32, #tpu.memory_space<vmem>>, vector<128x128xf32>,
    %c0_28 = arith.constant 0 : index
    %c0_29 = arith.constant 0 : index
    %62 = vector.load %arg9[%c0_28, %c0_29] : memref<128x128xf32, #tpu.memory_space<vmem>>, vector<128x128xf32>
    %cst_30 = arith.constant dense<0.000000e+00> : vector<128x128xf32>
    %63 = tpu.matmul %57, %6, %cst_30 {dimension_numbers = #tpu.dot_dimension_numbers<[0], [0], [1], [1], [0, 1, 1, 1], [], []>} : vector<16x128xbf16>, vector<16x128xbf16>, vector<128x128xf32> -> vector<128x128xf32>
    %64 = arith.addf %62, %63 : vector<128x128xf32>
    %c0_31 = arith.constant 0 : index
    %c0_32 = arith.constant 0 : index
    %65 = vector.load %arg9[%c0_31, %c0_32] : memref<128x128xf32, #tpu.memory_space<vmem>>, vector<128x128xf32>
    tpu.vector_store %arg9[%c0_31, %c0_32], %64 {strides = array<i32>} : memref<128x128xf32, #tpu.memory_space<vmem>>, vector<128x128xf32>,
    return
  }
  func.func @transform_0(%arg0: i32, %arg1: i32) -> (i32, i32) {
    %c4_i32 = arith.constant 4 : i32
    %0 = arith.muli %arg0, %c4_i32 : i32
    %1 = arith.addi %0, %arg1 : i32
    %c0_i32 = arith.constant 0 : i32
    %c0_i32_0 = arith.constant 0 : i32
    return %1, %c0_i32 : i32, i32
  }
  func.func @transform_1(%arg0: i32, %arg1: i32) -> (i32, i32) {
    %c0_i32 = arith.constant 0 : i32
    %c0_i32_0 = arith.constant 0 : i32
    %c0_i32_1 = arith.constant 0 : i32
    return %c0_i32, %c0_i32_0 : i32, i32
  }
  func.func @transform_2(%arg0: i32, %arg1: i32) -> (i32, i32) {
    %c0_i32 = arith.constant 0 : i32
    %c0_i32_0 = arith.constant 0 : i32
    %c0_i32_1 = arith.constant 0 : i32
    return %c0_i32, %c0_i32_0 : i32, i32
  }
  func.func @transform_3(%arg0: i32, %arg1: i32) -> (i32, i32) {
    %c0_i32 = arith.constant 0 : i32
    %c0_i32_0 = arith.constant 0 : i32
    %c0_i32_1 = arith.constant 0 : i32
    return %c0_i32, %c0_i32_0 : i32, i32
  }
  func.func @transform_4(%arg0: i32, %arg1: i32) -> (i32, i32) {
    %c4_i32 = arith.constant 4 : i32
    %0 = arith.muli %arg0, %c4_i32 : i32
    %1 = arith.addi %0, %arg1 : i32
    %c0_i32 = arith.constant 0 : i32
    %c0_i32_0 = arith.constant 0 : i32
    return %1, %c0_i32 : i32, i32
  }
  func.func @transform_5(%arg0: i32, %arg1: i32) -> (i32, i32) {
    %c0_i32 = arith.constant 0 : i32
    %c0_i32_0 = arith.constant 0 : i32
    %c0_i32_1 = arith.constant 0 : i32
    return %c0_i32, %c0_i32_0 : i32, i32
  }
  func.func @transform_6(%arg0: i32, %arg1: i32) -> (i32, i32) {
    %c0_i32 = arith.constant 0 : i32
    %c0_i32_0 = arith.constant 0 : i32
    return %arg0, %c0_i32 : i32, i32
  }
  func.func @transform_7(%arg0: i32, %arg1: i32) -> (i32, i32) {
    %c0_i32 = arith.constant 0 : i32
    %c0_i32_0 = arith.constant 0 : i32
    return %arg0, %c0_i32 : i32, i32
  }
  func.func @transform_8(%arg0: i32, %arg1: i32) -> (i32, i32) {
    %c0_i32 = arith.constant 0 : i32
    %c0_i32_0 = arith.constant 0 : i32
    return %arg0, %c0_i32 : i32, i32
  }
}

module attributes {stable_mosaic.version = 11 : i64} {
  func.func @_inference_kernel(%arg0: i32, %arg1: memref<16x128xf32, #tpu.memory_space<vmem>>, %arg2: memref<128x128xbf16, #tpu.memory_space<vmem>>, %arg3: memref<128x128xbf16, #tpu.memory_space<vmem>>, %arg4: memref<1x128xf32, #tpu.memory_space<vmem>>, %arg5: memref<16x128xf32, #tpu.memory_space<vmem>>, %arg6: memref<16x128xf32, #tpu.memory_space<vmem>>) attributes {dimension_semantics = [#tpu.dimension_semantics<parallel>], iteration_bounds = array<i64: 4>, scalar_prefetch = 0 : i64, scratch_operands = 0 : i64, tpu.core_type = #tpu.core_type<tc>, window_params = [{transform_indices = @transform_0, window_bounds = array<i64: 16, 128>}, {pipeline_mode = #tpu.pipeline_mode<synchronous>, transform_indices = @transform_1, window_bounds = array<i64: 128, 128>}, {pipeline_mode = #tpu.pipeline_mode<synchronous>, transform_indices = @transform_2, window_bounds = array<i64: 128, 128>}, {pipeline_mode = #tpu.pipeline_mode<synchronous>, transform_indices = @transform_3, window_bounds = array<i64: 1, 128>}, {transform_indices = @transform_4, window_bounds = array<i64: 16, 128>}, {transform_indices = @transform_5, window_bounds = array<i64: 16, 128>}]} {
    %c0 = arith.constant 0 : index
    %c0_0 = arith.constant 0 : index
    %0 = vector.load %arg1[%c0, %c0_0] : memref<16x128xf32, #tpu.memory_space<vmem>>, vector<16x128xf32>
    %1 = arith.mulf %0, %0 : vector<16x128xf32>
    %2 = arith.truncf %1 : vector<16x128xf32> to vector<16x128xbf16>
    %3 = arith.truncf %0 : vector<16x128xf32> to vector<16x128xbf16>
    %c0_1 = arith.constant 0 : index
    %c0_2 = arith.constant 0 : index
    %4 = vector.load %arg5[%c0_1, %c0_2] : memref<16x128xf32, #tpu.memory_space<vmem>>, vector<16x128xf32>
    %c0_3 = arith.constant 0 : index
    %c0_4 = arith.constant 0 : index
    %5 = vector.load %arg2[%c0_3, %c0_4] : memref<128x128xbf16, #tpu.memory_space<vmem>>, vector<128x128xbf16>
    %cst = arith.constant dense<0.000000e+00> : vector<16x128xf32>
    %6 = tpu.matmul %2, %5, %cst {dimension_numbers = #tpu.dot_dimension_numbers<[1], [0], [0], [1], [0, 0, 1, 1], [], []>} : vector<16x128xbf16>, vector<128x128xbf16>, vector<16x128xf32> -> vector<16x128xf32>
    %c0_5 = arith.constant 0 : index
    %c0_6 = arith.constant 0 : index
    %7 = vector.load %arg3[%c0_5, %c0_6] : memref<128x128xbf16, #tpu.memory_space<vmem>>, vector<128x128xbf16>
    %cst_7 = arith.constant dense<0.000000e+00> : vector<16x128xf32>
    %8 = tpu.matmul %3, %7, %cst_7 {dimension_numbers = #tpu.dot_dimension_numbers<[1], [0], [0], [1], [0, 0, 1, 1], [], []>} : vector<16x128xbf16>, vector<128x128xbf16>, vector<16x128xf32> -> vector<16x128xf32>
    %9 = arith.addf %6, %8 : vector<16x128xf32>
    %c0_8 = arith.constant 0 : index
    %c0_9 = arith.constant 0 : index
    %10 = vector.load %arg4[%c0_8, %c0_9] : memref<1x128xf32, #tpu.memory_space<vmem>>, vector<1x128xf32>
    %11 = vector.broadcast %10 : vector<1x128xf32> to vector<16x128xf32>
    %12 = arith.addf %11, %9 : vector<16x128xf32>
    %13 = arith.addf %4, %12 : vector<16x128xf32>
    %14 = tpu.iota {dimensions = array<i32: 1>} : vector<1x128xi32>
    %c8_i32 = arith.constant 8 : i32
    %15 = vector.broadcast %c8_i32 : i32 to vector<1x128xi32>
    %16 = arith.cmpi slt, %14, %15 : vector<1x128xi32>
    %cst_10 = arith.constant -1.000000e+30 : f32
    %17 = vector.shape_cast %16 : vector<1x128xi1> to vector<1x128xi1>
    %18 = vector.broadcast %17 : vector<1x128xi1> to vector<16x128xi1>
    %19 = vector.broadcast %cst_10 : f32 to vector<16x128xf32>
    %20 = arith.select %18, %13, %19 : vector<16x128xi1>, vector<16x128xf32>
    %cst_11 = arith.constant dense<0xFF800000> : vector<16xf32>
    %21 = vector.multi_reduction <maximumf>, %20, %cst_11 [1] : vector<16x128xf32> to vector<16xf32>
    %22 = vector.shape_cast %21 : vector<16xf32> to vector<16x1xf32>
    %23 = vector.broadcast %22 : vector<16x1xf32> to vector<16x128xf32>
    %24 = arith.subf %20, %23 : vector<16x128xf32>
    %25 = math.exp %24 : vector<16x128xf32>
    %cst_12 = arith.constant dense<0.000000e+00> : vector<16xf32>
    %26 = vector.multi_reduction <add>, %25, %cst_12 [1] : vector<16x128xf32> to vector<16xf32>
    %27 = vector.shape_cast %26 : vector<16xf32> to vector<16x1xf32>
    %28 = vector.broadcast %27 : vector<16x1xf32> to vector<16x128xf32>
    %29 = arith.divf %25, %28 : vector<16x128xf32>
    %c0_13 = arith.constant 0 : index
    %c0_14 = arith.constant 0 : index
    %30 = vector.load %arg6[%c0_13, %c0_14] : memref<16x128xf32, #tpu.memory_space<vmem>>, vector<16x128xf32>
    tpu.vector_store %arg6[%c0_13, %c0_14], %29 {strides = array<i32>} : memref<16x128xf32, #tpu.memory_space<vmem>>, vector<16x128xf32>,
    return
  }
  func.func @transform_0(%arg0: i32) -> (i32, i32) {
    %c0_i32 = arith.constant 0 : i32
    %c0_i32_0 = arith.constant 0 : i32
    return %arg0, %c0_i32 : i32, i32
  }
  func.func @transform_1(%arg0: i32) -> (i32, i32) {
    %c0_i32 = arith.constant 0 : i32
    %c0_i32_0 = arith.constant 0 : i32
    %c0_i32_1 = arith.constant 0 : i32
    return %c0_i32, %c0_i32_0 : i32, i32
  }
  func.func @transform_2(%arg0: i32) -> (i32, i32) {
    %c0_i32 = arith.constant 0 : i32
    %c0_i32_0 = arith.constant 0 : i32
    %c0_i32_1 = arith.constant 0 : i32
    return %c0_i32, %c0_i32_0 : i32, i32
  }
  func.func @transform_3(%arg0: i32) -> (i32, i32) {
    %c0_i32 = arith.constant 0 : i32
    %c0_i32_0 = arith.constant 0 : i32
    %c0_i32_1 = arith.constant 0 : i32
    return %c0_i32, %c0_i32_0 : i32, i32
  }
  func.func @transform_4(%arg0: i32) -> (i32, i32) {
    %c0_i32 = arith.constant 0 : i32
    %c0_i32_0 = arith.constant 0 : i32
    return %arg0, %c0_i32 : i32, i32
  }
  func.func @transform_5(%arg0: i32) -> (i32, i32) {
    %c0_i32 = arith.constant 0 : i32
    %c0_i32_0 = arith.constant 0 : i32
    return %arg0, %c0_i32 : i32, i32
  }
}

</mosaic_0001>

<llo_original>
// kernel: custom-call
$region0: #{custom-call}
  %s0 = inlined_call_operand.vmem [shape: f32[8], index: 0, kind: output, shape index: {}]

// kernel: closed_call.20
$region0: #{closed_call.20}
  #allocation0 [shape = 'u32[]', space=smem, size = 0x4, offset = 0x4, fixed_abs, tag = 'smem constant byte address 0x4 - core index']
  #allocation1 [shape = 'u32[144,128]{1,0:T(1,128)}', space=vmem, size = 0x12000, scoped, tag = 'internal scratch']
  %s0 = inlined_call_operand.vmem [shape: f32[64,128], index: 0, kind: input, shape index: {}]
  %s1 = inlined_call_operand.vmem [shape: bf16[128,128], index: 1, kind: input, shape index: {}]
  %s2 = inlined_call_operand.vmem [shape: bf16[128,128], index: 2, kind: input, shape index: {}]
  %s3 = inlined_call_operand.vmem [shape: f32[1,128], index: 3, kind: input, shape index: {}]
  %s4 = inlined_call_operand.vmem [shape: f32[8,128], index: 4, kind: output, shape index: {}]
  %s5 = sld [smem:[#allocation0]]
  $region53: #{closed_call.20} parent=0
    _
  %s7 = ssub.s32 1, %s5
  %s8 = scalar_select 0, %s7, %s5
  loop: start=0, step=1, limit=6
  $region2: #{closed_call.20} parent=0 // loop_pre_header
    _
  $region3: #{closed_call.20} parent=0 // loop_header
    %s10 = sphi 0, %s14
    %p11 = scmp.ge.s32.totalorder %s10, 6
    %s17 = sphi 0, %s29
    %s18 = sphi 0, %s25
    %s19 = sphi 0, %s17
    %s20 = sphi 0, %s18
    %s21 = sphi 0, %s19
    %s22 = sphi 0, %s20
    %s36 = sphi 0, %s38
    %s39 = sphi 0, %s36
    %s40 = sphi 0, %s39
    %s56 = sphi 0, %s40
    %s60 = sphi 0, %s60
    %s62 = sphi 0, %s60
    %s63 = sphi 0, %s62
    %s77 = sphi 0, %s63
    %s81 = sphi 0, %s81
    %s83 = sphi 0, %s81
    %s84 = sphi 0, %s83
    %s98 = sphi 0, %s84
    %s102 = sphi 0, %s102
    %s104 = sphi 0, %s102
    %s105 = sphi 0, %s104
    %s119 = sphi 0, %s105
    %s125 = sphi 0, %s127
    %s128 = sphi 0, %s125
    %s129 = sphi 0, %s128
    %s145 = sphi 0, %s129
  $region4: #{closed_call.20} parent=0 // loop_header_branch
    %13 = sbr.rel (%p11) target = $region8
  $region5: #{closed_call.20} parent=0 // loop_body
    %s15 = ssub.s32 %s10, 1
    %s16 = ssub.s32 %s10, 2
    %s23 = sadd.s32 1, %s18
    %p24 = scmp.ge.s32.totalorder %s23, 4
    %s25 = scalar_select %p24, 0, %s23
    %s26 = sadd.s32 1, %s17
    %s27 = scalar_select %p24, %s26, %s17
    %p28 = scmp.ge.s32.totalorder %s27, 1
    %s29 = scalar_select %p28, 0, %s27
    %s30 = smul.u32 %s17, 4
    %s31 = sadd.s32 %s30, %s18
    %s32 = smul.u32 %s29, 4
    %s33 = sadd.s32 %s32, %s25
    %s34 = ssub.s32 %s31, %s33
    %p35 = scmp.eq.s32.totalorder %s34, 0
    %s37 = sadd.s32 %s36, 1
    %s38 = scalar_select %p35, %s36, %s37
    %p41 = pneg %p35
    %p42 = scmp.eq.s32.totalorder %s10, 3
    %p43 = por %p41, %p42
    %p44 = scmp.ne.s32.totalorder %s36, %s39
    %p45 = scmp.eq.s32.totalorder %s10, 0
    %p46 = por %p44, %p45
    %p47 = scmp.ne.s32.totalorder %s36, %s39
    %p48 = scmp.eq.s32.totalorder %s15, 3
    %p49 = por %p47, %p48
    %p50 = scmp.ne.s32.totalorder %s39, %s40
    %p51 = scmp.eq.s32.totalorder %s15, 0
    %p52 = por %p50, %p51
    %p53 = scmp.ne.s32.totalorder %s39, %s40
    %p54 = scmp.eq.s32.totalorder %s16, 3
    %p55 = por %p53, %p54
    %p57 = scmp.ne.s32.totalorder %s40, %s56
    %p58 = scmp.eq.s32.totalorder %s16, 0
    %p59 = por %p57, %p58
    %s61 = sadd.s32 %s60, 1
    %p64 = scmp.eq.s32.totalorder %s10, 3
    %p65 = scmp.ne.s32.totalorder %s60, %s62
    %p66 = scmp.eq.s32.totalorder %s10, 0
    %p67 = por %p65, %p66
    %p68 = scmp.ne.s32.totalorder %s60, %s62
    %p69 = scmp.eq.s32.totalorder %s15, 3
    %p70 = por %p68, %p69
    %p71 = scmp.ne.s32.totalorder %s62, %s63
    %p72 = scmp.eq.s32.totalorder %s15, 0
    %p73 = por %p71, %p72
    %p74 = scmp.ne.s32.totalorder %s62, %s63
    %p75 = scmp.eq.s32.totalorder %s16, 3
    %p76 = por %p74, %p75
    %p78 = scmp.ne.s32.totalorder %s63, %s77
    %p79 = scmp.eq.s32.totalorder %s16, 0
    %p80 = por %p78, %p79
    %s82 = sadd.s32 %s81, 1
    %p85 = scmp.eq.s32.totalorder %s10, 3
    %p86 = scmp.ne.s32.totalorder %s81, %s83
    %p87 = scmp.eq.s32.totalorder %s10, 0
    %p88 = por %p86, %p87
    %p89 = scmp.ne.s32.totalorder %s81, %s83
    %p90 = scmp.eq.s32.totalorder %s15, 3
    %p91 = por %p89, %p90
    %p92 = scmp.ne.s32.totalorder %s83, %s84
    %p93 = scmp.eq.s32.totalorder %s15, 0
    %p94 = por %p92, %p93
    %p95 = scmp.ne.s32.totalorder %s83, %s84
    %p96 = scmp.eq.s32.totalorder %s16, 3
    %p97 = por %p95, %p96
    %p99 = scmp.ne.s32.totalorder %s84, %s98
    %p100 = scmp.eq.s32.totalorder %s16, 0
    %p101 = por %p99, %p100
    %s103 = sadd.s32 %s102, 1
    %p106 = scmp.eq.s32.totalorder %s10, 3
    %p107 = scmp.ne.s32.totalorder %s102, %s104
    %p108 = scmp.eq.s32.totalorder %s10, 0
    %p109 = por %p107, %p108
    %p110 = scmp.ne.s32.totalorder %s102, %s104
    %p111 = scmp.eq.s32.totalorder %s15, 3
    %p112 = por %p110, %p111
    %p113 = scmp.ne.s32.totalorder %s104, %s105
    %p114 = scmp.eq.s32.totalorder %s15, 0
    %p115 = por %p113, %p114
    %p116 = scmp.ne.s32.totalorder %s104, %s105
    %p117 = scmp.eq.s32.totalorder %s16, 3
    %p118 = por %p116, %p117
    %p120 = scmp.ne.s32.totalorder %s105, %s119
    %p121 = scmp.eq.s32.totalorder %s16, 0
    %p122 = por %p120, %p121
    %s123 = ssub.s32 %s17, %s29
    %p124 = scmp.eq.s32.totalorder %s123, 0
    %s126 = sadd.s32 %s125, 1
    %s127 = scalar_select %p124, %s125, %s126
    %p130 = pneg %p124
    %p131 = scmp.eq.s32.totalorder %s10, 3
    %p132 = por %p130, %p131
    %p133 = scmp.ne.s32.totalorder %s125, %s128
    %p134 = scmp.eq.s32.totalorder %s10, 0
    %p135 = por %p133, %p134
    %p136 = scmp.ne.s32.totalorder %s125, %s128
    %p137 = scmp.eq.s32.totalorder %s15, 3
    %p138 = por %p136, %p137
    %p139 = scmp.ne.s32.totalorder %s128, %s129
    %p140 = scmp.eq.s32.totalorder %s15, 0
    %p141 = por %p139, %p140
    %p142 = scmp.ne.s32.totalorder %s128, %s129
    %p143 = scmp.eq.s32.totalorder %s16, 3
    %p144 = por %p142, %p143
    %p146 = scmp.ne.s32.totalorder %s129, %s145
    %p147 = scmp.eq.s32.totalorder %s16, 0
    %p148 = por %p146, %p147
    %p149 = scmp.le.s32.totalorder 1, %s10
    %p150 = scmp.lt.s32.totalorder %s10, 5
    %p151 = pnand %p149, %p150
    %p152 = pneg %p151
    // Predicated region
    $region9: #{closed_call.20} parent=5 // pred_check
      _
    $region10: #{closed_call.20} parent=5 // pred_check_branch
      %154 = sbr.rel (%p151) target = $region12
    $region11: #{closed_call.20} parent=5 // pred_region
      %s155 = ssub.s32 %s10, 1
      // Predicated region
      $region13: #{closed_call.20} parent=11 // pred_check
        %p156 = pneg %p73
      $region14: #{closed_call.20} parent=11 // pred_check_branch
        %158 = sbr.rel (%p156) target = $region16
      $region15: #{closed_call.20} parent=11 // pred_region
        _
      $region16: #{closed_call.20} parent=11 // pred_fallthru
        _
      // Predicated region
      $region17: #{closed_call.20} parent=11 // pred_check
        %p159 = pneg %p94
      $region18: #{closed_call.20} parent=11 // pred_check_branch
        %161 = sbr.rel (%p159) target = $region20
      $region19: #{closed_call.20} parent=11 // pred_region
        _
      $region20: #{closed_call.20} parent=11 // pred_fallthru
        _
      // Predicated region
      $region21: #{closed_call.20} parent=11 // pred_check
        %p162 = pneg %p115
      $region22: #{closed_call.20} parent=11 // pred_check_branch
        %164 = sbr.rel (%p162) target = $region24
      $region23: #{closed_call.20} parent=11 // pred_region
        _
      $region24: #{closed_call.20} parent=11 // pred_fallthru
        _
    $region12: #{closed_call.20} parent=5 // pred_fallthru
      _
    %p165 = scmp.lt.s32.totalorder %s10, 4
    // Predicated region
    $region25: #{closed_call.20} parent=5 // pred_check
      %p166 = pneg %p165
    $region26: #{closed_call.20} parent=5 // pred_check_branch
      %168 = sbr.rel (%p166) target = $region28
    $region27: #{closed_call.20} parent=5 // pred_region
      // Predicated region
      $region29: #{closed_call.20} parent=27 // pred_check
        %p169 = pneg %p46
      $region30: #{closed_call.20} parent=27 // pred_check_branch
        %171 = sbr.rel (%p169) target = $region32
      $region31: #{closed_call.20} parent=27 // pred_region
        %s172 = smul.u32 %s17, 4
        %s173 = sadd.s32 %s172, %s18
        %s174 = smul.u32 2, %s173
        %p175 = scmp.lt.s32.totalorder %s174, 7
        %s176 = scalar_select %p175, %s174, 7
        %s177 = smul.addr %s176, 8
        %s178 = scalar_lea.vmem %s0, %s177
        %s179 = smul.u32 %s17, 4
        %s180 = sadd.s32 %s179, %s18
        %s181 = smul.u32 2, %s180
      $region32: #{closed_call.20} parent=27 // pred_fallthru
        _
    $region28: #{closed_call.20} parent=5 // pred_fallthru
      _
    %p182 = scmp.le.s32.totalorder 1, %s10
    %p183 = scmp.lt.s32.totalorder %s10, 5
    %p184 = pnand %p182, %p183
    %p185 = pneg %p184
    // Predicated region
    $region33: #{closed_call.20} parent=5 // pred_check
      _
    $region34: #{closed_call.20} parent=5 // pred_check_branch
      %187 = sbr.rel (%p184) target = $region36
    $region35: #{closed_call.20} parent=5 // pred_region
      %s188 = ssub.s32 %s10, 1
      %s189 = smul.u32 %s19, 4
      %s190 = sadd.s32 %s189, %s20
      %s191 = smul.u32 2, %s190
      %p192 = scmp.lt.s32.totalorder %s191, 7
      %s193 = scalar_select %p192, %s191, 7
      %s194 = smul.addr %s193, 8
      %s195 = scalar_lea.vmem %s0, %s194
      %p196 = pneg %p52
      %p197 = pneg %p49
      %p198 = pneg %p73
      %p199 = pneg %p70
      %p200 = pneg %p94
      %p201 = pneg %p91
      %p202 = pneg %p115
      %p203 = pneg %p112
      %p204 = pneg %p141
      %p205 = pneg %p138
      %p206 = scmp.lt.s32.totalorder %s19, 0
      %s207 = scalar_select %p206, %s19, 0
      %s208 = smul.addr %s207, 8
      %s209 = scalar_lea.vmem %s4, %s208
      %s210 = smul.u32 %s19, 4
      %s211 = sadd.s32 %s210, %s20
      %s212 = smul.u32 2, %s211
      %p213 = scmp.lt.s32.totalorder %s212, 7
      %s214 = scalar_select %p213, %s212, 7
      %s215 = smul.addr %s214, 8
      %s216 = scalar_lea.vmem %s0, %s215
      %s217 = smul.u32 %s19, 4
      %s218 = sadd.s32 %s217, %s20
      %s219 = smul.u32 2, %s218
      %p220 = scmp.lt.s32.totalorder %s19, 0
      %s221 = scalar_select %p220, %s19, 0
      %s222 = smul.addr %s221, 8
      %s223 = scalar_lea.vmem %s4, %s222
      %p225 = scmp.eq.s32.totalorder %s20, 0
      // Predicated region
      $region37: #{closed_call.20} parent=35 // pred_check
        %p226 = pneg %p225
      $region38: #{closed_call.20} parent=35 // pred_check_branch
        %228 = sbr.rel (%p226) target = $region40
      $region39: #{closed_call.20} parent=35 // pred_region
        %229 = vst [vmem:[%s223] sm:$0xff] 1e+30
      $region40: #{closed_call.20} parent=35 // pred_fallthru
        _
      %v230 = vld [vmem:[%s216] sm:$0xff]
      %v231 = vld [vmem:[%s216 + $0x8] sm:$0xff]
      %v232 = vmul.f32 %v230, %v230
      %v233 = vmul.f32 %v231, %v231
      %v234 = vpack.c.bf16 %v233, %v232
      %v235 = vpack.c.bf16 %v231, %v230
      %v236 = vld [vmem:[%s1] sm:$0xf]
      %v237 = vld [vmem:[%s1 + $0x4] sm:$0xf]
      %v238 = vld [vmem:[%s1 + $0x8] sm:$0xf]
      %v239 = vld [vmem:[%s1 + $0xc] sm:$0xf]
      %v240 = vld [vmem:[%s1 + $0x10] sm:$0xf]
      %v241 = vld [vmem:[%s1 + $0x14] sm:$0xf]
      %v242 = vld [vmem:[%s1 + $0x18] sm:$0xf]
      %v243 = vld [vmem:[%s1 + $0x1c] sm:$0xf]
      %v244 = vld [vmem:[%s1 + $0x20] sm:$0xf]
      %v245 = vld [vmem:[%s1 + $0x24] sm:$0xf]
      %v246 = vld [vmem:[%s1 + $0x28] sm:$0xf]
      %v247 = vld [vmem:[%s1 + $0x2c] sm:$0xf]
      %v248 = vld [vmem:[%s1 + $0x30] sm:$0xf]
      %v249 = vld [vmem:[%s1 + $0x34] sm:$0xf]
      %v250 = vld [vmem:[%s1 + $0x38] sm:$0xf]
      %v251 = vld [vmem:[%s1 + $0x3c] sm:$0xf]
      %v252 = vld [vmem:[%s2] sm:$0xf]
      %v253 = vld [vmem:[%s2 + $0x4] sm:$0xf]
      %v254 = vld [vmem:[%s2 + $0x8] sm:$0xf]
      %v255 = vld [vmem:[%s2 + $0xc] sm:$0xf]
      %v256 = vld [vmem:[%s2 + $0x10] sm:$0xf]
      %v257 = vld [vmem:[%s2 + $0x14] sm:$0xf]
      %v258 = vld [vmem:[%s2 + $0x18] sm:$0xf]
      %v259 = vld [vmem:[%s2 + $0x1c] sm:$0xf]
      %v260 = vld [vmem:[%s2 + $0x20] sm:$0xf]
      %v261 = vld [vmem:[%s2 + $0x24] sm:$0xf]
      %v262 = vld [vmem:[%s2 + $0x28] sm:$0xf]
      %v263 = vld [vmem:[%s2 + $0x2c] sm:$0xf]
      %v264 = vld [vmem:[%s2 + $0x30] sm:$0xf]
      %v265 = vld [vmem:[%s2 + $0x34] sm:$0xf]
      %v266 = vld [vmem:[%s2 + $0x38] sm:$0xf]
      %v267 = vld [vmem:[%s2 + $0x3c] sm:$0xf]
      %v284 = vunpack.c.l.b16 %v252
      %v285 = vunpack.c.l.b16 %v253
      %v286 = vunpack.c.l.b16 %v254
      %v287 = vunpack.c.l.b16 %v255
      %v288 = vunpack.c.l.b16 %v256
      %v289 = vunpack.c.l.b16 %v257
      %v290 = vunpack.c.l.b16 %v258
      %v291 = vunpack.c.l.b16 %v259
      %v292 = vunpack.c.l.b16 %v260
      %v293 = vunpack.c.l.b16 %v261
      %v294 = vunpack.c.l.b16 %v262
      %v295 = vunpack.c.l.b16 %v263
      %v296 = vunpack.c.l.b16 %v264
      %v297 = vunpack.c.l.b16 %v265
      %v298 = vunpack.c.l.b16 %v266
      %v299 = vunpack.c.l.b16 %v267
      %v300 = vpack.c.b16 %v285, %v284
      %v301 = vpack.c.b16 %v287, %v286
      %v302 = vpack.c.b16 %v289, %v288
      %v303 = vpack.c.b16 %v291, %v290
      %v304 = vpack.c.b16 %v293, %v292
      %v305 = vpack.c.b16 %v295, %v294
      %v306 = vpack.c.b16 %v297, %v296
      %v307 = vpack.c.b16 %v299, %v298
      %316 = vmatprep.subr.bf16.mxu0 0
      %317 = vmatpush1.bf16.msra.mxu0 %v300
      %318 = vmatprep.subr.bf16.mxu0 0
      %319 = vmatpush1.bf16.msra.mxu0 %v301
      %320 = vmatprep.subr.bf16.mxu0 0
      %321 = vmatpush1.bf16.msra.mxu0 %v302
      %322 = vmatprep.subr.bf16.mxu0 0
      %323 = vmatpush1.bf16.msra.mxu0 %v303
      %324 = vmatprep.subr.bf16.mxu0 0
      %325 = vmatpush1.bf16.msra.mxu0 %v304
      %326 = vmatprep.subr.bf16.mxu0 0
      %327 = vmatpush1.bf16.msra.mxu0 %v305
      %328 = vmatprep.subr.bf16.mxu0 0
      %329 = vmatpush1.bf16.msra.mxu0 %v306
      %330 = vmatprep.subr.bf16.mxu0 0
      %331 = vmatpush1.bf16.msra.mxu0 %v307
      %332 = vmatprep.subr.bf16.mxu0 0
      %333 = vmatpush1.bf16.msra.mxu0 0
      %334 = vmatprep.subr.bf16.mxu0 0
      %335 = vmatpush1.bf16.msra.mxu0 0
      %336 = vmatprep.subr.bf16.mxu0 0
      %337 = vmatpush1.bf16.msra.mxu0 0
      %338 = vmatprep.subr.bf16.mxu0 0
      %339 = vmatpush1.bf16.msra.mxu0 0
      %340 = vmatprep.subr.bf16.mxu0 0
      %341 = vmatpush1.bf16.msra.mxu0 0
      %342 = vmatprep.subr.bf16.mxu0 0
      %343 = vmatpush1.bf16.msra.mxu0 0
      %344 = vmatprep.subr.bf16.mxu0 0
      %345 = vmatpush1.bf16.msra.mxu0 0
      %346 = vmatprep.subr.bf16.mxu0 0
      %347 = vmatpush1.bf16.msra.mxu0 0
      %348 = vmatprep.mubr.bf16.mxu0 0
      %349 = vmatmul.mubr.bf16.gmra.mrb[0].mxu0 %v235
      %v350 = vpop.f32.mrb[0].mxu0
      %v351 = vadd.f32 0.0, %v350
      %v352 = vpop.f32.mrb[0].mxu0
      %v353 = vpop.f32.mrb[0].mxu0
      %v354 = vadd.f32 0.0, %v353
      %v355 = vpop.f32.mrb[0].mxu0
      %356 = vdwg.mxu0
      %v373 = vunpack.c.l.b16 %v236
      %v374 = vunpack.c.l.b16 %v237
      %v375 = vunpack.c.l.b16 %v238
      %v376 = vunpack.c.l.b16 %v239
      %v377 = vunpack.c.l.b16 %v240
      %v378 = vunpack.c.l.b16 %v241
      %v379 = vunpack.c.l.b16 %v242
      %v380 = vunpack.c.l.b16 %v243
      %v381 = vunpack.c.l.b16 %v244
      %v382 = vunpack.c.l.b16 %v245
      %v383 = vunpack.c.l.b16 %v246
      %v384 = vunpack.c.l.b16 %v247
      %v385 = vunpack.c.l.b16 %v248
      %v386 = vunpack.c.l.b16 %v249
      %v387 = vunpack.c.l.b16 %v250
      %v388 = vunpack.c.l.b16 %v251
      %v389 = vpack.c.b16 %v374, %v373
      %v390 = vpack.c.b16 %v376, %v375
      %v391 = vpack.c.b16 %v378, %v377
      %v392 = vpack.c.b16 %v380, %v379
      %v393 = vpack.c.b16 %v382, %v381
      %v394 = vpack.c.b16 %v384, %v383
      %v395 = vpack.c.b16 %v386, %v385
      %v396 = vpack.c.b16 %v388, %v387
      %405 = vmatprep.subr.bf16.mxu0 0
      %406 = vmatpush1.bf16.msra.mxu0 %v389
      %407 = vmatprep.subr.bf16.mxu0 0
      %408 = vmatpush1.bf16.msra.mxu0 %v390
      %409 = vmatprep.subr.bf16.mxu0 0
      %410 = vmatpush1.bf16.msra.mxu0 %v391
      %411 = vmatprep.subr.bf16.mxu0 0
      %412 = vmatpush1.bf16.msra.mxu0 %v392
      %413 = vmatprep.subr.bf16.mxu0 0
      %414 = vmatpush1.bf16.msra.mxu0 %v393
      %415 = vmatprep.subr.bf16.mxu0 0
      %416 = vmatpush1.bf16.msra.mxu0 %v394
      %417 = vmatprep.subr.bf16.mxu0 0
      %418 = vmatpush1.bf16.msra.mxu0 %v395
      %419 = vmatprep.subr.bf16.mxu0 0
      %420 = vmatpush1.bf16.msra.mxu0 %v396
      %421 = vmatprep.subr.bf16.mxu0 0
      %422 = vmatpush1.bf16.msra.mxu0 0
      %423 = vmatprep.subr.bf16.mxu0 0
      %424 = vmatpush1.bf16.msra.mxu0 0
      %425 = vmatprep.subr.bf16.mxu0 0
      %426 = vmatpush1.bf16.msra.mxu0 0
      %427 = vmatprep.subr.bf16.mxu0 0
      %428 = vmatpush1.bf16.msra.mxu0 0
      %429 = vmatprep.subr.bf16.mxu0 0
      %430 = vmatpush1.bf16.msra.mxu0 0
      %431 = vmatprep.subr.bf16.mxu0 0
      %432 = vmatpush1.bf16.msra.mxu0 0
      %433 = vmatprep.subr.bf16.mxu0 0
      %434 = vmatpush1.bf16.msra.mxu0 0
      %435 = vmatprep.subr.bf16.mxu0 0
      %436 = vmatpush1.bf16.msra.mxu0 0
      %437 = vmatprep.mubr.bf16.mxu0 0
      %438 = vmatmul.mubr.bf16.gmra.mrb[0].mxu0 %v234
      %v439 = vpop.f32.mrb[0].mxu0
      %v440 = vadd.f32 %v351, %v439
      %v441 = vpop.f32.mrb[0].mxu0
      %v442 = vpop.f32.mrb[0].mxu0
      %v443 = vadd.f32 %v354, %v442
      %v444 = vpop.f32.mrb[0].mxu0
      %445 = vdwg.mxu0
      %v446 = vld [vmem:[%s3] sm:$0x1]
      %v448 = vlaneseq
      %v449 = vshrl.u32 %v448, 7
      %v450 = vsub.s32 0, %v449
      %v451 = vrot.slane %v446, %v450
      %v453 = vadd.f32 %v451, %v440
      %v454 = vadd.f32 %v451, %v443
      %v455 = vlaneseq
      %v456 = vshrl.u32 %v455, 7
      %v457 = vadd.s32 %v456, 8
      %s458 = smul.u32 %s19, 4
      %s459 = sadd.s32 %s458, %s20
      %s460 = smul.u32 %s459, 16
      %v461 = vstv %s460
      %v462 = vadd.s32 %v456, %v461
      %v463 = vadd.s32 %v457, %v461
      %v464 = vlaneseq
      %v465 = vand.u32 %v464, 127
      %vm466 = vcmp.lt.s32.totalorder %v462, 64
      %vm467 = vcmp.lt.s32.totalorder %v463, 64
      %vm468 = vcmp.lt.s32.totalorder %v465, 8
      %v469 = vsel %vm466, 1, 0
      %v470 = vsel %vm467, 1, 0
      %vm471 = vcmp.eq.s32.totalorder %v469, 1
      %vm472 = vcmp.eq.s32.totalorder %v470, 1
      %v473 = vsel %vm468, 1, 0
      %vm474 = vcmp.eq.s32.totalorder %v473, 1
      %vm475 = vmand %vm471, %vm474
      %vm476 = vmand %vm472, %vm474
      %v477 = vsel %vm475, %v453, 1e+30
      %v478 = vsel %vm476, %v454, 1e+30
      %v479 = vmin.f32 %v477, %v478
      %480 = vmin.xlane.f32.xlu0 %v479
      %v481 = vpop.xlane.xlu0 %480
      %v482 = vrot.slane %v481, 4
      %v483 = vmin.f32 %v481, %v482
      %v484 = vrot.slane %v483, 2
      %v485 = vmin.f32 %v483, %v484
      %v486 = vrot.slane %v485, 1
      %v487 = vmin.f32 %v485, %v486
      %s488 = vtos %v487
      %v489 = vld [vmem:[%s223] sm:$0xff]
      %v490 = vstv %s488
      %v491 = vmin.f32 %v489, %v490
      %492 = vst [vmem:[%s223] sm:$0xff] %v491
      %p493 = scmp.lt.s32.totalorder %s19, 0
      %s494 = scalar_select %p493, %s19, 0
      %s495 = smul.addr %s494, 8
      %s496 = scalar_lea.vmem %s4, %s495
      // Predicated region
      $region41: #{closed_call.20} parent=35 // pred_check
        %p497 = pneg %p138
      $region42: #{closed_call.20} parent=35 // pred_check_branch
        %499 = sbr.rel (%p497) target = $region44
      $region43: #{closed_call.20} parent=35 // pred_region
        _
      $region44: #{closed_call.20} parent=35 // pred_fallthru
        _
      // Predicated region
      $region45: #{closed_call.20} parent=35 // pred_check
        %p500 = pneg %p138
      $region46: #{closed_call.20} parent=35 // pred_check_branch
        %502 = sbr.rel (%p500) target = $region48
      $region47: #{closed_call.20} parent=35 // pred_region
        %p503 = scmp.lt.s32.totalorder %s19, 0
        %s504 = scalar_select %p503, %s19, 0
        %s505 = smul.addr %s504, 8
        %s506 = scalar_lea.vmem %s4, %s505
      $region48: #{closed_call.20} parent=35 // pred_fallthru
        _
    $region36: #{closed_call.20} parent=5 // pred_fallthru
      _
    %p507 = scmp.le.s32.totalorder 2, %s10
    // Predicated region
    $region49: #{closed_call.20} parent=5 // pred_check
      %p508 = pneg %p507
    $region50: #{closed_call.20} parent=5 // pred_check_branch
      %510 = sbr.rel (%p508) target = $region52
    $region51: #{closed_call.20} parent=5 // pred_region
      %s511 = ssub.s32 %s10, 2
    $region52: #{closed_call.20} parent=5 // pred_fallthru
      _
  $region6: #{closed_call.20} parent=0 // loop_footer
    %s14 = sadd.s32 1, %s10
  $region7: #{closed_call.20} parent=0 // loop_footer_branch
    %9 = sbr.rel target = $region3
  $region8: #{closed_call.20} parent=0 // loop_exit
    _

// kernel: closed_call.21
$region0: #{closed_call.21}
  #allocation0 [shape = 'u32[]', space=smem, size = 0x4, offset = 0x4, fixed_abs, tag = 'smem constant byte address 0x4 - core index']
  #allocation1 [shape = 'u32[144,128]{1,0:T(1,128)}', space=vmem, size = 0x12000, scoped, tag = 'internal scratch']
  #allocation2 [shape = 'f32[1,1]{1,0:T(1,128)S(6)}', space=smem, size = 0x200, scoped, tag = 'scoped memory for closed_call.21']
  %s0 = inlined_call_operand.vmem [shape: f32[64,128], index: 0, kind: input, shape index: {}]
  %s1 = inlined_call_operand.vmem [shape: bf16[128,128], index: 1, kind: input, shape index: {}]
  %s2 = inlined_call_operand.vmem [shape: bf16[128,128], index: 2, kind: input, shape index: {}]
  %s3 = inlined_call_operand.vmem [shape: f32[1,128], index: 3, kind: input, shape index: {}]
  %s4 = inlined_call_operand.vmem [shape: f32[64,128], index: 4, kind: input, shape index: {}]
  %s5 = inlined_call_operand.<no memory space> [shape: f32[1,1], index: 5, kind: input, shape index: {}]
  %s6 = inlined_call_operand.vmem [shape: f32[128,128], index: 6, kind: output, shape index: {0}]
  %s7 = inlined_call_operand.vmem [shape: f32[128,128], index: 7, kind: output, shape index: {1}]
  %s8 = inlined_call_operand.vmem [shape: f32[8,128], index: 8, kind: output, shape index: {2}]
  %9 = xla_tuple %s6, %s7, %s8
  %s10 = sld [smem:[#allocation0]]
  $region77: #{closed_call.21} parent=0
    _
  %s12 = ssub.s32 1, %s10
  %s13 = scalar_select 0, %s12, %s10
  %14 = sst [smem:[#allocation2]] %s5
  loop: start=0, step=1, limit=6
  $region2: #{closed_call.21} parent=0 // loop_pre_header
    _
  $region3: #{closed_call.21} parent=0 // loop_header
    %s16 = sphi 0, %s20
    %p17 = scmp.ge.s32.totalorder %s16, 6
    %s23 = sphi 0, %s35
    %s24 = sphi 0, %s31
    %s25 = sphi 0, %s23
    %s26 = sphi 0, %s24
    %s27 = sphi 0, %s25
    %s28 = sphi 0, %s26
    %s42 = sphi 0, %s44
    %s45 = sphi 0, %s42
    %s46 = sphi 0, %s45
    %s62 = sphi 0, %s46
    %s66 = sphi 0, %s66
    %s68 = sphi 0, %s66
    %s69 = sphi 0, %s68
    %s83 = sphi 0, %s69
    %s87 = sphi 0, %s87
    %s89 = sphi 0, %s87
    %s90 = sphi 0, %s89
    %s104 = sphi 0, %s90
    %s108 = sphi 0, %s108
    %s110 = sphi 0, %s108
    %s111 = sphi 0, %s110
    %s125 = sphi 0, %s111
    %s135 = sphi 0, %s137
    %s138 = sphi 0, %s135
    %s139 = sphi 0, %s138
    %s155 = sphi 0, %s139
    %s159 = sphi 0, %s159
    %s161 = sphi 0, %s159
    %s162 = sphi 0, %s161
    %s176 = sphi 0, %s162
    %s182 = sphi 0, %s184
    %s185 = sphi 0, %s182
    %s186 = sphi 0, %s185
    %s202 = sphi 0, %s186
    %s208 = sphi 0, %s210
    %s211 = sphi 0, %s208
    %s212 = sphi 0, %s211
    %s228 = sphi 0, %s212
    %s234 = sphi 0, %s236
    %s237 = sphi 0, %s234
    %s238 = sphi 0, %s237
    %s254 = sphi 0, %s238
  $region4: #{closed_call.21} parent=0 // loop_header_branch
    %19 = sbr.rel (%p17) target = $region8
  $region5: #{closed_call.21} parent=0 // loop_body
    %s21 = ssub.s32 %s16, 1
    %s22 = ssub.s32 %s16, 2
    %s29 = sadd.s32 1, %s24
    %p30 = scmp.ge.s32.totalorder %s29, 4
    %s31 = scalar_select %p30, 0, %s29
    %s32 = sadd.s32 1, %s23
    %s33 = scalar_select %p30, %s32, %s23
    %p34 = scmp.ge.s32.totalorder %s33, 1
    %s35 = scalar_select %p34, 0, %s33
    %s36 = smul.u32 %s23, 4
    %s37 = sadd.s32 %s36, %s24
    %s38 = smul.u32 %s35, 4
    %s39 = sadd.s32 %s38, %s31
    %s40 = ssub.s32 %s37, %s39
    %p41 = scmp.eq.s32.totalorder %s40, 0
    %s43 = sadd.s32 %s42, 1
    %s44 = scalar_select %p41, %s42, %s43
    %p47 = pneg %p41
    %p48 = scmp.eq.s32.totalorder %s16, 3
    %p49 = por %p47, %p48
    %p50 = scmp.ne.s32.totalorder %s42, %s45
    %p51 = scmp.eq.s32.totalorder %s16, 0
    %p52 = por %p50, %p51
    %p53 = scmp.ne.s32.totalorder %s42, %s45
    %p54 = scmp.eq.s32.totalorder %s21, 3
    %p55 = por %p53, %p54
    %p56 = scmp.ne.s32.totalorder %s45, %s46
    %p57 = scmp.eq.s32.totalorder %s21, 0
    %p58 = por %p56, %p57
    %p59 = scmp.ne.s32.totalorder %s45, %s46
    %p60 = scmp.eq.s32.totalorder %s22, 3
    %p61 = por %p59, %p60
    %p63 = scmp.ne.s32.totalorder %s46, %s62
    %p64 = scmp.eq.s32.totalorder %s22, 0
    %p65 = por %p63, %p64
    %s67 = sadd.s32 %s66, 1
    %p70 = scmp.eq.s32.totalorder %s16, 3
    %p71 = scmp.ne.s32.totalorder %s66, %s68
    %p72 = scmp.eq.s32.totalorder %s16, 0
    %p73 = por %p71, %p72
    %p74 = scmp.ne.s32.totalorder %s66, %s68
    %p75 = scmp.eq.s32.totalorder %s21, 3
    %p76 = por %p74, %p75
    %p77 = scmp.ne.s32.totalorder %s68, %s69
    %p78 = scmp.eq.s32.totalorder %s21, 0
    %p79 = por %p77, %p78
    %p80 = scmp.ne.s32.totalorder %s68, %s69
    %p81 = scmp.eq.s32.totalorder %s22, 3
    %p82 = por %p80, %p81
    %p84 = scmp.ne.s32.totalorder %s69, %s83
    %p85 = scmp.eq.s32.totalorder %s22, 0
    %p86 = por %p84, %p85
    %s88 = sadd.s32 %s87, 1
    %p91 = scmp.eq.s32.totalorder %s16, 3
    %p92 = scmp.ne.s32.totalorder %s87, %s89
    %p93 = scmp.eq.s32.totalorder %s16, 0
    %p94 = por %p92, %p93
    %p95 = scmp.ne.s32.totalorder %s87, %s89
    %p96 = scmp.eq.s32.totalorder %s21, 3
    %p97 = por %p95, %p96
    %p98 = scmp.ne.s32.totalorder %s89, %s90
    %p99 = scmp.eq.s32.totalorder %s21, 0
    %p100 = por %p98, %p99
    %p101 = scmp.ne.s32.totalorder %s89, %s90
    %p102 = scmp.eq.s32.totalorder %s22, 3
    %p103 = por %p101, %p102
    %p105 = scmp.ne.s32.totalorder %s90, %s104
    %p106 = scmp.eq.s32.totalorder %s22, 0
    %p107 = por %p105, %p106
    %s109 = sadd.s32 %s108, 1
    %p112 = scmp.eq.s32.totalorder %s16, 3
    %p113 = scmp.ne.s32.totalorder %s108, %s110
    %p114 = scmp.eq.s32.totalorder %s16, 0
    %p115 = por %p113, %p114
    %p116 = scmp.ne.s32.totalorder %s108, %s110
    %p117 = scmp.eq.s32.totalorder %s21, 3
    %p118 = por %p116, %p117
    %p119 = scmp.ne.s32.totalorder %s110, %s111
    %p120 = scmp.eq.s32.totalorder %s21, 0
    %p121 = por %p119, %p120
    %p122 = scmp.ne.s32.totalorder %s110, %s111
    %p123 = scmp.eq.s32.totalorder %s22, 3
    %p124 = por %p122, %p123
    %p126 = scmp.ne.s32.totalorder %s111, %s125
    %p127 = scmp.eq.s32.totalorder %s22, 0
    %p128 = por %p126, %p127
    %s129 = smul.u32 %s23, 4
    %s130 = sadd.s32 %s129, %s24
    %s131 = smul.u32 %s35, 4
    %s132 = sadd.s32 %s131, %s31
    %s133 = ssub.s32 %s130, %s132
    %p134 = scmp.eq.s32.totalorder %s133, 0
    %s136 = sadd.s32 %s135, 1
    %s137 = scalar_select %p134, %s135, %s136
    %p140 = pneg %p134
    %p141 = scmp.eq.s32.totalorder %s16, 3
    %p142 = por %p140, %p141
    %p143 = scmp.ne.s32.totalorder %s135, %s138
    %p144 = scmp.eq.s32.totalorder %s16, 0
    %p145 = por %p143, %p144
    %p146 = scmp.ne.s32.totalorder %s135, %s138
    %p147 = scmp.eq.s32.totalorder %s21, 3
    %p148 = por %p146, %p147
    %p149 = scmp.ne.s32.totalorder %s138, %s139
    %p150 = scmp.eq.s32.totalorder %s21, 0
    %p151 = por %p149, %p150
    %p152 = scmp.ne.s32.totalorder %s138, %s139
    %p153 = scmp.eq.s32.totalorder %s22, 3
    %p154 = por %p152, %p153
    %p156 = scmp.ne.s32.totalorder %s139, %s155
    %p157 = scmp.eq.s32.totalorder %s22, 0
    %p158 = por %p156, %p157
    %s160 = sadd.s32 %s159, 1
    %p163 = scmp.eq.s32.totalorder %s16, 3
    %p164 = scmp.ne.s32.totalorder %s159, %s161
    %p165 = scmp.eq.s32.totalorder %s16, 0
    %p166 = por %p164, %p165
    %p167 = scmp.ne.s32.totalorder %s159, %s161
    %p168 = scmp.eq.s32.totalorder %s21, 3
    %p169 = por %p167, %p168
    %p170 = scmp.ne.s32.totalorder %s161, %s162
    %p171 = scmp.eq.s32.totalorder %s21, 0
    %p172 = por %p170, %p171
    %p173 = scmp.ne.s32.totalorder %s161, %s162
    %p174 = scmp.eq.s32.totalorder %s22, 3
    %p175 = por %p173, %p174
    %p177 = scmp.ne.s32.totalorder %s162, %s176
    %p178 = scmp.eq.s32.totalorder %s22, 0
    %p179 = por %p177, %p178
    %s180 = ssub.s32 %s23, %s35
    %p181 = scmp.eq.s32.totalorder %s180, 0
    %s183 = sadd.s32 %s182, 1
    %s184 = scalar_select %p181, %s182, %s183
    %p187 = pneg %p181
    %p188 = scmp.eq.s32.totalorder %s16, 3
    %p189 = por %p187, %p188
    %p190 = scmp.ne.s32.totalorder %s182, %s185
    %p191 = scmp.eq.s32.totalorder %s16, 0
    %p192 = por %p190, %p191
    %p193 = scmp.ne.s32.totalorder %s182, %s185
    %p194 = scmp.eq.s32.totalorder %s21, 3
    %p195 = por %p193, %p194
    %p196 = scmp.ne.s32.totalorder %s185, %s186
    %p197 = scmp.eq.s32.totalorder %s21, 0
    %p198 = por %p196, %p197
    %p199 = scmp.ne.s32.totalorder %s185, %s186
    %p200 = scmp.eq.s32.totalorder %s22, 3
    %p201 = por %p199, %p200
    %p203 = scmp.ne.s32.totalorder %s186, %s202
    %p204 = scmp.eq.s32.totalorder %s22, 0
    %p205 = por %p203, %p204
    %s206 = ssub.s32 %s23, %s35
    %p207 = scmp.eq.s32.totalorder %s206, 0
    %s209 = sadd.s32 %s208, 1
    %s210 = scalar_select %p207, %s208, %s209
    %p213 = pneg %p207
    %p214 = scmp.eq.s32.totalorder %s16, 3
    %p215 = por %p213, %p214
    %p216 = scmp.ne.s32.totalorder %s208, %s211
    %p217 = scmp.eq.s32.totalorder %s16, 0
    %p218 = por %p216, %p217
    %p219 = scmp.ne.s32.totalorder %s208, %s211
    %p220 = scmp.eq.s32.totalorder %s21, 3
    %p221 = por %p219, %p220
    %p222 = scmp.ne.s32.totalorder %s211, %s212
    %p223 = scmp.eq.s32.totalorder %s21, 0
    %p224 = por %p222, %p223
    %p225 = scmp.ne.s32.totalorder %s211, %s212
    %p226 = scmp.eq.s32.totalorder %s22, 3
    %p227 = por %p225, %p226
    %p229 = scmp.ne.s32.totalorder %s212, %s228
    %p230 = scmp.eq.s32.totalorder %s22, 0
    %p231 = por %p229, %p230
    %s232 = ssub.s32 %s23, %s35
    %p233 = scmp.eq.s32.totalorder %s232, 0
    %s235 = sadd.s32 %s234, 1
    %s236 = scalar_select %p233, %s234, %s235
    %p239 = pneg %p233
    %p240 = scmp.eq.s32.totalorder %s16, 3
    %p241 = por %p239, %p240
    %p242 = scmp.ne.s32.totalorder %s234, %s237
    %p243 = scmp.eq.s32.totalorder %s16, 0
    %p244 = por %p242, %p243
    %p245 = scmp.ne.s32.totalorder %s234, %s237
    %p246 = scmp.eq.s32.totalorder %s21, 3
    %p247 = por %p245, %p246
    %p248 = scmp.ne.s32.totalorder %s237, %s238
    %p249 = scmp.eq.s32.totalorder %s21, 0
    %p250 = por %p248, %p249
    %p251 = scmp.ne.s32.totalorder %s237, %s238
    %p252 = scmp.eq.s32.totalorder %s22, 3
    %p253 = por %p251, %p252
    %p255 = scmp.ne.s32.totalorder %s238, %s254
    %p256 = scmp.eq.s32.totalorder %s22, 0
    %p257 = por %p255, %p256
    %p258 = scmp.le.s32.totalorder 1, %s16
    %p259 = scmp.lt.s32.totalorder %s16, 5
    %p260 = pnand %p258, %p259
    %p261 = pneg %p260
    // Predicated region
    $region9: #{closed_call.21} parent=5 // pred_check
      _
    $region10: #{closed_call.21} parent=5 // pred_check_branch
      %263 = sbr.rel (%p260) target = $region12
    $region11: #{closed_call.21} parent=5 // pred_region
      %s264 = ssub.s32 %s16, 1
      // Predicated region
      $region13: #{closed_call.21} parent=11 // pred_check
        %p265 = pneg %p79
      $region14: #{closed_call.21} parent=11 // pred_check_branch
        %267 = sbr.rel (%p265) target = $region16
      $region15: #{closed_call.21} parent=11 // pred_region
        _
      $region16: #{closed_call.21} parent=11 // pred_fallthru
        _
      // Predicated region
      $region17: #{closed_call.21} parent=11 // pred_check
        %p268 = pneg %p100
      $region18: #{closed_call.21} parent=11 // pred_check_branch
        %270 = sbr.rel (%p268) target = $region20
      $region19: #{closed_call.21} parent=11 // pred_region
        _
      $region20: #{closed_call.21} parent=11 // pred_fallthru
        _
      // Predicated region
      $region21: #{closed_call.21} parent=11 // pred_check
        %p271 = pneg %p121
      $region22: #{closed_call.21} parent=11 // pred_check_branch
        %273 = sbr.rel (%p271) target = $region24
      $region23: #{closed_call.21} parent=11 // pred_region
        _
      $region24: #{closed_call.21} parent=11 // pred_fallthru
        _
      // Predicated region
      $region25: #{closed_call.21} parent=11 // pred_check
        %p274 = pneg %p172
      $region26: #{closed_call.21} parent=11 // pred_check_branch
        %276 = sbr.rel (%p274) target = $region28
      $region27: #{closed_call.21} parent=11 // pred_region
        _
      $region28: #{closed_call.21} parent=11 // pred_fallthru
        _
    $region12: #{closed_call.21} parent=5 // pred_fallthru
      _
    %p277 = scmp.lt.s32.totalorder %s16, 4
    // Predicated region
    $region29: #{closed_call.21} parent=5 // pred_check
      %p278 = pneg %p277
    $region30: #{closed_call.21} parent=5 // pred_check_branch
      %280 = sbr.rel (%p278) target = $region32
    $region31: #{closed_call.21} parent=5 // pred_region
      // Predicated region
      $region33: #{closed_call.21} parent=31 // pred_check
        %p281 = pneg %p52
      $region34: #{closed_call.21} parent=31 // pred_check_branch
        %283 = sbr.rel (%p281) target = $region36
      $region35: #{closed_call.21} parent=31 // pred_region
        %s284 = smul.u32 %s23, 4
        %s285 = sadd.s32 %s284, %s24
        %s286 = smul.u32 2, %s285
        %p287 = scmp.lt.s32.totalorder %s286, 7
        %s288 = scalar_select %p287, %s286, 7
        %s289 = smul.addr %s288, 8
        %s290 = scalar_lea.vmem %s0, %s289
        %s291 = smul.u32 %s23, 4
        %s292 = sadd.s32 %s291, %s24
        %s293 = smul.u32 2, %s292
      $region36: #{closed_call.21} parent=31 // pred_fallthru
        _
      // Predicated region
      $region37: #{closed_call.21} parent=31 // pred_check
        %p294 = pneg %p145
      $region38: #{closed_call.21} parent=31 // pred_check_branch
        %296 = sbr.rel (%p294) target = $region40
      $region39: #{closed_call.21} parent=31 // pred_region
        %s297 = smul.u32 %s23, 4
        %s298 = sadd.s32 %s297, %s24
        %s299 = smul.u32 2, %s298
        %p300 = scmp.lt.s32.totalorder %s299, 7
        %s301 = scalar_select %p300, %s299, 7
        %s302 = smul.addr %s301, 8
        %s303 = scalar_lea.vmem %s4, %s302
        %s304 = smul.u32 %s23, 4
        %s305 = sadd.s32 %s304, %s24
        %s306 = smul.u32 2, %s305
      $region40: #{closed_call.21} parent=31 // pred_fallthru
        _
    $region32: #{closed_call.21} parent=5 // pred_fallthru
      _
    %p307 = scmp.le.s32.totalorder 1, %s16
    %p308 = scmp.lt.s32.totalorder %s16, 5
    %p309 = pnand %p307, %p308
    %p310 = pneg %p309
    // Predicated region
    $region41: #{closed_call.21} parent=5 // pred_check
      _
    $region42: #{closed_call.21} parent=5 // pred_check_branch
      %312 = sbr.rel (%p309) target = $region44
    $region43: #{closed_call.21} parent=5 // pred_region
      %s313 = ssub.s32 %s16, 1
      %s314 = smul.u32 %s25, 4
      %s315 = sadd.s32 %s314, %s26
      %s316 = smul.u32 2, %s315
      %p317 = scmp.lt.s32.totalorder %s316, 7
      %s318 = scalar_select %p317, %s316, 7
      %s319 = smul.addr %s318, 8
      %s320 = scalar_lea.vmem %s0, %s319
      %p321 = pneg %p58
      %p322 = pneg %p55
      %p323 = pneg %p79
      %p324 = pneg %p76
      %p325 = pneg %p100
      %p326 = pneg %p97
      %p327 = pneg %p121
      %p328 = pneg %p118
      %s329 = smul.u32 %s25, 4
      %s330 = sadd.s32 %s329, %s26
      %s331 = smul.u32 2, %s330
      %p332 = scmp.lt.s32.totalorder %s331, 7
      %s333 = scalar_select %p332, %s331, 7
      %s334 = smul.addr %s333, 8
      %s335 = scalar_lea.vmem %s4, %s334
      %p336 = pneg %p151
      %p337 = pneg %p148
      %p338 = pneg %p172
      %p339 = pneg %p169
      %p340 = pneg %p198
      %p341 = pneg %p195
      %s342 = smul.u32 16, %s25
      %p343 = scmp.lt.s32.totalorder %s342, 15
      %s344 = scalar_select %p343, %s342, 15
      %s345 = smul.addr %s344, 8
      %s346 = scalar_lea.vmem %s6, %s345
      %p347 = pneg %p224
      %p348 = pneg %p221
      %s349 = smul.u32 16, %s25
      %p350 = scmp.lt.s32.totalorder %s349, 15
      %s351 = scalar_select %p350, %s349, 15
      %s352 = smul.addr %s351, 8
      %s353 = scalar_lea.vmem %s7, %s352
      %p354 = pneg %p250
      %p355 = pneg %p247
      %p356 = scmp.lt.s32.totalorder %s25, 0
      %s357 = scalar_select %p356, %s25, 0
      %s358 = smul.addr %s357, 8
      %s359 = scalar_lea.vmem %s8, %s358
      %s360 = smul.u32 %s25, 4
      %s361 = sadd.s32 %s360, %s26
      %s362 = smul.u32 2, %s361
      %p363 = scmp.lt.s32.totalorder %s362, 7
      %s364 = scalar_select %p363, %s362, 7
      %s365 = smul.addr %s364, 8
      %s366 = scalar_lea.vmem %s0, %s365
      %s367 = smul.u32 %s25, 4
      %s368 = sadd.s32 %s367, %s26
      %s369 = smul.u32 2, %s368
      %s370 = smul.u32 %s25, 4
      %s371 = sadd.s32 %s370, %s26
      %s372 = smul.u32 2, %s371
      %p373 = scmp.lt.s32.totalorder %s372, 7
      %s374 = scalar_select %p373, %s372, 7
      %s375 = smul.addr %s374, 8
      %s376 = scalar_lea.vmem %s4, %s375
      %s377 = smul.u32 %s25, 4
      %s378 = sadd.s32 %s377, %s26
      %s379 = smul.u32 2, %s378
      %s380 = smul.u32 16, %s25
      %p381 = scmp.lt.s32.totalorder %s380, 15
      %s382 = scalar_select %p381, %s380, 15
      %s383 = smul.addr %s382, 8
      %s384 = scalar_lea.vmem %s6, %s383
      %s385 = smul.u32 16, %s25
      %s386 = smul.u32 16, %s25
      %p387 = scmp.lt.s32.totalorder %s386, 15
      %s388 = scalar_select %p387, %s386, 15
      %s389 = smul.addr %s388, 8
      %s390 = scalar_lea.vmem %s7, %s389
      %s391 = smul.u32 16, %s25
      %p392 = scmp.lt.s32.totalorder %s25, 0
      %s393 = scalar_select %p392, %s25, 0
      %s394 = smul.addr %s393, 8
      %s395 = scalar_lea.vmem %s8, %s394
      %p397 = scmp.eq.s32.totalorder %s26, 0
      // Predicated region
      $region45: #{closed_call.21} parent=43 // pred_check
        %p398 = pneg %p397
      $region46: #{closed_call.21} parent=43 // pred_check_branch
        %400 = sbr.rel (%p398) target = $region48
      $region47: #{closed_call.21} parent=43 // pred_region
        %401 = vst [vmem:[%s384] sm:$0xff] 0.0
        %402 = vst [vmem:[%s384 + $0x8] sm:$0xff] 0.0
        %403 = vst [vmem:[%s384 + $0x10] sm:$0xff] 0.0
        %404 = vst [vmem:[%s384 + $0x18] sm:$0xff] 0.0
        %405 = vst [vmem:[%s384 + $0x20] sm:$0xff] 0.0
        %406 = vst [vmem:[%s384 + $0x28] sm:$0xff] 0.0
        %407 = vst [vmem:[%s384 + $0x30] sm:$0xff] 0.0
        %408 = vst [vmem:[%s384 + $0x38] sm:$0xff] 0.0
        %409 = vst [vmem:[%s384 + $0x40] sm:$0xff] 0.0
        %410 = vst [vmem:[%s384 + $0x48] sm:$0xff] 0.0
        %411 = vst [vmem:[%s384 + $0x50] sm:$0xff] 0.0
        %412 = vst [vmem:[%s384 + $0x58] sm:$0xff] 0.0
        %413 = vst [vmem:[%s384 + $0x60] sm:$0xff] 0.0
        %414 = vst [vmem:[%s384 + $0x68] sm:$0xff] 0.0
        %415 = vst [vmem:[%s384 + $0x70] sm:$0xff] 0.0
        %416 = vst [vmem:[%s384 + $0x78] sm:$0xff] 0.0
        %417 = vst [vmem:[%s390] sm:$0xff] 0.0
        %418 = vst [vmem:[%s390 + $0x8] sm:$0xff] 0.0
        %419 = vst [vmem:[%s390 + $0x10] sm:$0xff] 0.0
        %420 = vst [vmem:[%s390 + $0x18] sm:$0xff] 0.0
        %421 = vst [vmem:[%s390 + $0x20] sm:$0xff] 0.0
        %422 = vst [vmem:[%s390 + $0x28] sm:$0xff] 0.0
        %423 = vst [vmem:[%s390 + $0x30] sm:$0xff] 0.0
        %424 = vst [vmem:[%s390 + $0x38] sm:$0xff] 0.0
        %425 = vst [vmem:[%s390 + $0x40] sm:$0xff] 0.0
        %426 = vst [vmem:[%s390 + $0x48] sm:$0xff] 0.0
        %427 = vst [vmem:[%s390 + $0x50] sm:$0xff] 0.0
        %428 = vst [vmem:[%s390 + $0x58] sm:$0xff] 0.0
        %429 = vst [vmem:[%s390 + $0x60] sm:$0xff] 0.0
        %430 = vst [vmem:[%s390 + $0x68] sm:$0xff] 0.0
        %431 = vst [vmem:[%s390 + $0x70] sm:$0xff] 0.0
        %432 = vst [vmem:[%s390 + $0x78] sm:$0xff] 0.0
        %433 = vst [vmem:[%s395] sm:$0xff] 0.0
      $region48: #{closed_call.21} parent=43 // pred_fallthru
        _
      %v434 = vld [vmem:[%s366] sm:$0xff]
      %v435 = vld [vmem:[%s366 + $0x8] sm:$0xff]
      %v436 = vmul.f32 %v434, %v434
      %v437 = vmul.f32 %v435, %v435
      %v438 = vpack.c.bf16 %v437, %v436
      %v439 = vpack.c.bf16 %v435, %v434
      %v440 = vld [vmem:[%s1] sm:$0xf]
      %v441 = vld [vmem:[%s1 + $0x4] sm:$0xf]
      %v442 = vld [vmem:[%s1 + $0x8] sm:$0xf]
      %v443 = vld [vmem:[%s1 + $0xc] sm:$0xf]
      %v444 = vld [vmem:[%s1 + $0x10] sm:$0xf]
      %v445 = vld [vmem:[%s1 + $0x14] sm:$0xf]
      %v446 = vld [vmem:[%s1 + $0x18] sm:$0xf]
      %v447 = vld [vmem:[%s1 + $0x1c] sm:$0xf]
      %v448 = vld [vmem:[%s1 + $0x20] sm:$0xf]
      %v449 = vld [vmem:[%s1 + $0x24] sm:$0xf]
      %v450 = vld [vmem:[%s1 + $0x28] sm:$0xf]
      %v451 = vld [vmem:[%s1 + $0x2c] sm:$0xf]
      %v452 = vld [vmem:[%s1 + $0x30] sm:$0xf]
      %v453 = vld [vmem:[%s1 + $0x34] sm:$0xf]
      %v454 = vld [vmem:[%s1 + $0x38] sm:$0xf]
      %v455 = vld [vmem:[%s1 + $0x3c] sm:$0xf]
      %v456 = vld [vmem:[%s2] sm:$0xf]
      %v457 = vld [vmem:[%s2 + $0x4] sm:$0xf]
      %v458 = vld [vmem:[%s2 + $0x8] sm:$0xf]
      %v459 = vld [vmem:[%s2 + $0xc] sm:$0xf]
      %v460 = vld [vmem:[%s2 + $0x10] sm:$0xf]
      %v461 = vld [vmem:[%s2 + $0x14] sm:$0xf]
      %v462 = vld [vmem:[%s2 + $0x18] sm:$0xf]
      %v463 = vld [vmem:[%s2 + $0x1c] sm:$0xf]
      %v464 = vld [vmem:[%s2 + $0x20] sm:$0xf]
      %v465 = vld [vmem:[%s2 + $0x24] sm:$0xf]
      %v466 = vld [vmem:[%s2 + $0x28] sm:$0xf]
      %v467 = vld [vmem:[%s2 + $0x2c] sm:$0xf]
      %v468 = vld [vmem:[%s2 + $0x30] sm:$0xf]
      %v469 = vld [vmem:[%s2 + $0x34] sm:$0xf]
      %v470 = vld [vmem:[%s2 + $0x38] sm:$0xf]
      %v471 = vld [vmem:[%s2 + $0x3c] sm:$0xf]
      %v488 = vunpack.c.l.b16 %v456
      %v489 = vunpack.c.l.b16 %v457
      %v490 = vunpack.c.l.b16 %v458
      %v491 = vunpack.c.l.b16 %v459
      %v492 = vunpack.c.l.b16 %v460
      %v493 = vunpack.c.l.b16 %v461
      %v494 = vunpack.c.l.b16 %v462
      %v495 = vunpack.c.l.b16 %v463
      %v496 = vunpack.c.l.b16 %v464
      %v497 = vunpack.c.l.b16 %v465
      %v498 = vunpack.c.l.b16 %v466
      %v499 = vunpack.c.l.b16 %v467
      %v500 = vunpack.c.l.b16 %v468
      %v501 = vunpack.c.l.b16 %v469
      %v502 = vunpack.c.l.b16 %v470
      %v503 = vunpack.c.l.b16 %v471
      %v504 = vpack.c.b16 %v489, %v488
      %v505 = vpack.c.b16 %v491, %v490
      %v506 = vpack.c.b16 %v493, %v492
      %v507 = vpack.c.b16 %v495, %v494
      %v508 = vpack.c.b16 %v497, %v496
      %v509 = vpack.c.b16 %v499, %v498
      %v510 = vpack.c.b16 %v501, %v500
      %v511 = vpack.c.b16 %v503, %v502
      %520 = vmatprep.subr.bf16.mxu0 0
      %521 = vmatpush1.bf16.msra.mxu0 %v504
      %522 = vmatprep.subr.bf16.mxu0 0
      %523 = vmatpush1.bf16.msra.mxu0 %v505
      %524 = vmatprep.subr.bf16.mxu0 0
      %525 = vmatpush1.bf16.msra.mxu0 %v506
      %526 = vmatprep.subr.bf16.mxu0 0
      %527 = vmatpush1.bf16.msra.mxu0 %v507
      %528 = vmatprep.subr.bf16.mxu0 0
      %529 = vmatpush1.bf16.msra.mxu0 %v508
      %530 = vmatprep.subr.bf16.mxu0 0
      %531 = vmatpush1.bf16.msra.mxu0 %v509
      %532 = vmatprep.subr.bf16.mxu0 0
      %533 = vmatpush1.bf16.msra.mxu0 %v510
      %534 = vmatprep.subr.bf16.mxu0 0
      %535 = vmatpush1.bf16.msra.mxu0 %v511
      %536 = vmatprep.subr.bf16.mxu0 0
      %537 = vmatpush1.bf16.msra.mxu0 0
      %538 = vmatprep.subr.bf16.mxu0 0
      %539 = vmatpush1.bf16.msra.mxu0 0
      %540 = vmatprep.subr.bf16.mxu0 0
      %541 = vmatpush1.bf16.msra.mxu0 0
      %542 = vmatprep.subr.bf16.mxu0 0
      %543 = vmatpush1.bf16.msra.mxu0 0
      %544 = vmatprep.subr.bf16.mxu0 0
      %545 = vmatpush1.bf16.msra.mxu0 0
      %546 = vmatprep.subr.bf16.mxu0 0
      %547 = vmatpush1.bf16.msra.mxu0 0
      %548 = vmatprep.subr.bf16.mxu0 0
      %549 = vmatpush1.bf16.msra.mxu0 0
      %550 = vmatprep.subr.bf16.mxu0 0
      %551 = vmatpush1.bf16.msra.mxu0 0
      %552 = vmatprep.mubr.bf16.mxu0 0
      %553 = vmatmul.mubr.bf16.gmra.mrb[0].mxu0 %v439
      %v554 = vpop.f32.mrb[0].mxu0
      %v555 = vadd.f32 0.0, %v554
      %v556 = vpop.f32.mrb[0].mxu0
      %v557 = vpop.f32.mrb[0].mxu0
      %v558 = vadd.f32 0.0, %v557
      %v559 = vpop.f32.mrb[0].mxu0
      %560 = vdwg.mxu0
      %v577 = vunpack.c.l.b16 %v440
      %v578 = vunpack.c.l.b16 %v441
      %v579 = vunpack.c.l.b16 %v442
      %v580 = vunpack.c.l.b16 %v443
      %v581 = vunpack.c.l.b16 %v444
      %v582 = vunpack.c.l.b16 %v445
      %v583 = vunpack.c.l.b16 %v446
      %v584 = vunpack.c.l.b16 %v447
      %v585 = vunpack.c.l.b16 %v448
      %v586 = vunpack.c.l.b16 %v449
      %v587 = vunpack.c.l.b16 %v450
      %v588 = vunpack.c.l.b16 %v451
      %v589 = vunpack.c.l.b16 %v452
      %v590 = vunpack.c.l.b16 %v453
      %v591 = vunpack.c.l.b16 %v454
      %v592 = vunpack.c.l.b16 %v455
      %v593 = vpack.c.b16 %v578, %v577
      %v594 = vpack.c.b16 %v580, %v579
      %v595 = vpack.c.b16 %v582, %v581
      %v596 = vpack.c.b16 %v584, %v583
      %v597 = vpack.c.b16 %v586, %v585
      %v598 = vpack.c.b16 %v588, %v587
      %v599 = vpack.c.b16 %v590, %v589
      %v600 = vpack.c.b16 %v592, %v591
      %609 = vmatprep.subr.bf16.mxu0 0
      %610 = vmatpush1.bf16.msra.mxu0 %v593
      %611 = vmatprep.subr.bf16.mxu0 0
      %612 = vmatpush1.bf16.msra.mxu0 %v594
      %613 = vmatprep.subr.bf16.mxu0 0
      %614 = vmatpush1.bf16.msra.mxu0 %v595
      %615 = vmatprep.subr.bf16.mxu0 0
      %616 = vmatpush1.bf16.msra.mxu0 %v596
      %617 = vmatprep.subr.bf16.mxu0 0
      %618 = vmatpush1.bf16.msra.mxu0 %v597
      %619 = vmatprep.subr.bf16.mxu0 0
      %620 = vmatpush1.bf16.msra.mxu0 %v598
      %621 = vmatprep.subr.bf16.mxu0 0
      %622 = vmatpush1.bf16.msra.mxu0 %v599
      %623 = vmatprep.subr.bf16.mxu0 0
      %624 = vmatpush1.bf16.msra.mxu0 %v600
      %625 = vmatprep.subr.bf16.mxu0 0
      %626 = vmatpush1.bf16.msra.mxu0 0
      %627 = vmatprep.subr.bf16.mxu0 0
      %628 = vmatpush1.bf16.msra.mxu0 0
      %629 = vmatprep.subr.bf16.mxu0 0
      %630 = vmatpush1.bf16.msra.mxu0 0
      %631 = vmatprep.subr.bf16.mxu0 0
      %632 = vmatpush1.bf16.msra.mxu0 0
      %633 = vmatprep.subr.bf16.mxu0 0
      %634 = vmatpush1.bf16.msra.mxu0 0
      %635 = vmatprep.subr.bf16.mxu0 0
      %636 = vmatpush1.bf16.msra.mxu0 0
      %637 = vmatprep.subr.bf16.mxu0 0
      %638 = vmatpush1.bf16.msra.mxu0 0
      %639 = vmatprep.subr.bf16.mxu0 0
      %640 = vmatpush1.bf16.msra.mxu0 0
      %641 = vmatprep.mubr.bf16.mxu0 0
      %642 = vmatmul.mubr.bf16.gmra.mrb[0].mxu0 %v438
      %v643 = vpop.f32.mrb[0].mxu0
      %v644 = vadd.f32 %v555, %v643
      %v645 = vpop.f32.mrb[0].mxu0
      %v646 = vpop.f32.mrb[0].mxu0
      %v647 = vadd.f32 %v558, %v646
      %v648 = vpop.f32.mrb[0].mxu0
      %649 = vdwg.mxu0
      %v650 = vld [vmem:[%s3] sm:$0x1]
      %v652 = vlaneseq
      %v653 = vshrl.u32 %v652, 7
      %v654 = vsub.s32 0, %v653
      %v655 = vrot.slane %v650, %v654
      %v657 = vadd.f32 %v655, %v644
      %v658 = vadd.f32 %v655, %v647
      %s659 = sld [smem:[#allocation2]]
      %v660 = vstv %s659
      %v661 = vmul.f32 %v660, %v657
      %v662 = vmul.f32 %v660, %v658
      %s663 = ssub.f32 1.0, %s659
      %v664 = vld [vmem:[%s376] sm:$0xff]
      %v665 = vld [vmem:[%s376 + $0x8] sm:$0xff]
      %v666 = vstv %s663
      %v667 = vmul.f32 %v666, %v664
      %v668 = vmul.f32 %v666, %v665
      %v669 = vadd.f32 %v661, %v667
      %v670 = vadd.f32 %v662, %v668
      %v671 = vlaneseq
      %v672 = vand.u32 %v671, 127
      %v673 = vlaneseq
      %v674 = vshrl.u32 %v673, 7
      %v675 = vadd.s32 %v674, 8
      %s676 = smul.u32 %s25, 4
      %s677 = sadd.s32 %s676, %s26
      %s678 = smul.u32 %s677, 16
      %v679 = vstv %s678
      %v680 = vadd.s32 %v674, %v679
      %v681 = vadd.s32 %v675, %v679
      %vm682 = vcmp.lt.s32.totalorder %v672, 8
      %v683 = vsel %vm682, 1, 0
      %vm684 = vcmp.eq.s32.totalorder %v683, 1
      %v685 = vsel %vm684, %v669, -1e+30
      %v686 = vsel %vm684, %v670, -1e+30
      %687 = vmax.xlane.f32.xlu0 %v685
      %v688 = vpop.xlane.xlu0 %687
      %689 = vmax.xlane.f32.xlu0 %v686
      %v690 = vpop.xlane.xlu0 %689
      %v691 = vsub.f32 %v685, %v688
      %v692 = vsub.f32 %v686, %v690
      %v693 = vmul.f32 %v691, 1.442695
      %v694 = vpow.pop %v693
      %v695 = vmul.f32 %v692, 1.442695
      %v696 = vpow.pop %v695
      %697 = vadd.xlane.f32.xlu0 %v694
      %v698 = vpop.xlane.xlu0 %697
      %699 = vadd.xlane.f32.xlu0 %v696
      %v700 = vpop.xlane.xlu0 %699
      %v701 = vrcp.pop %v698
      %v702 = vmul.f32 %v694, %v701
      %v703 = vrcp.pop %v700
      %v704 = vmul.f32 %v696, %v703
      %vm705 = vcmp.lt.s32.totalorder %v680, 64
      %vm706 = vcmp.lt.s32.totalorder %v681, 64
      %v707 = vsel %vm705, 1, 0
      %v708 = vsel %vm706, 1, 0
      %vm709 = vcmp.eq.s32.totalorder %v707, 1
      %vm710 = vcmp.eq.s32.totalorder %v708, 1
      %v711 = vsel %vm709, %v702, 0.0
      %v712 = vsel %vm710, %v704, 0.0
      %v713 = vld [vmem:[%s395] sm:$0xff]
      %v714 = vadd.f32 %v711, %v712
      %v715 = vrot.slane %v714, 4
      %v716 = vadd.f32 %v714, %v715
      %v717 = vrot.slane %v716, 2
      %v718 = vadd.f32 %v716, %v717
      %v719 = vrot.slane %v718, 1
      %v720 = vadd.f32 %v718, %v719
      %v721 = vadd.f32 %v713, %v720
      %722 = vst [vmem:[%s395] sm:$0xff] %v721
      %v723 = vpack.c.bf16 %v712, %v711
      %v724 = vld [vmem:[%s384] sm:$0xff]
      %v725 = vld [vmem:[%s384 + $0x8] sm:$0xff]
      %v726 = vld [vmem:[%s384 + $0x10] sm:$0xff]
      %v727 = vld [vmem:[%s384 + $0x18] sm:$0xff]
      %v728 = vld [vmem:[%s384 + $0x20] sm:$0xff]
      %v729 = vld [vmem:[%s384 + $0x28] sm:$0xff]
      %v730 = vld [vmem:[%s384 + $0x30] sm:$0xff]
      %v731 = vld [vmem:[%s384 + $0x38] sm:$0xff]
      %v732 = vld [vmem:[%s384 + $0x40] sm:$0xff]
      %v733 = vld [vmem:[%s384 + $0x48] sm:$0xff]
      %v734 = vld [vmem:[%s384 + $0x50] sm:$0xff]
      %v735 = vld [vmem:[%s384 + $0x58] sm:$0xff]
      %v736 = vld [vmem:[%s384 + $0x60] sm:$0xff]
      %v737 = vld [vmem:[%s384 + $0x68] sm:$0xff]
      %v738 = vld [vmem:[%s384 + $0x70] sm:$0xff]
      %v739 = vld [vmem:[%s384 + $0x78] sm:$0xff]
      %740 = vxpose.xlu0.c.b16.start [1/8] %v723, 128
      %741 = vxpose.xlu0.c.b16.cont [2/8] 0, 128
      %742 = vxpose.xlu0.c.b16.cont [3/8] 0, 128
      %743 = vxpose.xlu0.c.b16.cont [4/8] 0, 128
      %744 = vxpose.xlu0.c.b16.cont [5/8] 0, 128
      %745 = vxpose.xlu0.c.b16.cont [6/8] 0, 128
      %746 = vxpose.xlu0.c.b16.cont [7/8] 0, 128
      %747 = vxpose.xlu0.c.b16.end [8/8] 0, 128
      %v748 = vpop.trf.xlu0
      %v749 = vpop.trf.xlu0
      %v750 = vpop.trf.xlu0
      %v751 = vpop.trf.xlu0
      %v752 = vpop.trf.xlu0
      %v753 = vpop.trf.xlu0
      %v754 = vpop.trf.xlu0
      %v755 = vpop.trf.xlu0
      %vm756 = vcmask 130048
      %v758 = vsel %vm756, %v748, 0
      %v761 = vsel %vm756, %v749, 0
      %v764 = vsel %vm756, %v750, 0
      %v767 = vsel %vm756, %v751, 0
      %v770 = vsel %vm756, %v752, 0
      %v773 = vsel %vm756, %v753, 0
      %v776 = vsel %vm756, %v754, 0
      %v779 = vsel %vm756, %v755, 0
      %781 = vmatprep.subr.bf16.mxu0 0
      %782 = vmatpush1.bf16.msra.mxu0 %v438
      %783 = vmatprep.subr.bf16.mxu0 0
      %784 = vmatpush1.bf16.msra.mxu0 0
      %785 = vmatprep.subr.bf16.mxu0 0
      %786 = vmatpush1.bf16.msra.mxu0 0
      %787 = vmatprep.subr.bf16.mxu0 0
      %788 = vmatpush1.bf16.msra.mxu0 0
      %789 = vmatprep.subr.bf16.mxu0 0
      %790 = vmatpush1.bf16.msra.mxu0 0
      %791 = vmatprep.subr.bf16.mxu0 0
      %792 = vmatpush1.bf16.msra.mxu0 0
      %793 = vmatprep.subr.bf16.mxu0 0
      %794 = vmatpush1.bf16.msra.mxu0 0
      %795 = vmatprep.subr.bf16.mxu0 0
      %796 = vmatpush1.bf16.msra.mxu0 0
      %797 = vmatprep.subr.bf16.mxu0 0
      %798 = vmatpush1.bf16.msra.mxu0 0
      %799 = vmatprep.subr.bf16.mxu0 0
      %800 = vmatpush1.bf16.msra.mxu0 0
      %801 = vmatprep.subr.bf16.mxu0 0
      %802 = vmatpush1.bf16.msra.mxu0 0
      %803 = vmatprep.subr.bf16.mxu0 0
      %804 = vmatpush1.bf16.msra.mxu0 0
      %805 = vmatprep.subr.bf16.mxu0 0
      %806 = vmatpush1.bf16.msra.mxu0 0
      %807 = vmatprep.subr.bf16.mxu0 0
      %808 = vmatpush1.bf16.msra.mxu0 0
      %809 = vmatprep.subr.bf16.mxu0 0
      %810 = vmatpush1.bf16.msra.mxu0 0
      %811 = vmatprep.subr.bf16.mxu0 0
      %812 = vmatpush1.bf16.msra.mxu0 0
      %813 = vmatprep.mubr.bf16.mxu0 0
      %814 = vmatmul.mubr.bf16.gmra.mrb[0].mxu0 %v758
      %v815 = vpop.f32.mrb[0].mxu0
      %v816 = vadd.f32 0.0, %v815
      %v817 = vpop.f32.mrb[0].mxu0
      %v818 = vpop.f32.mrb[0].mxu0
      %v819 = vadd.f32 0.0, %v818
      %v820 = vpop.f32.mrb[0].mxu0
      %821 = vmatprep.mubr.bf16.mxu0 0
      %822 = vmatmul.mubr.bf16.gmra.mrb[0].mxu0 %v761
      %v823 = vpop.f32.mrb[0].mxu0
      %v824 = vadd.f32 0.0, %v823
      %v825 = vpop.f32.mrb[0].mxu0
      %v826 = vpop.f32.mrb[0].mxu0
      %v827 = vadd.f32 0.0, %v826
      %v828 = vpop.f32.mrb[0].mxu0
      %829 = vmatprep.mubr.bf16.mxu0 0
      %830 = vmatmul.mubr.bf16.gmra.mrb[0].mxu0 %v764
      %v831 = vpop.f32.mrb[0].mxu0
      %v832 = vadd.f32 0.0, %v831
      %v833 = vpop.f32.mrb[0].mxu0
      %v834 = vpop.f32.mrb[0].mxu0
      %v835 = vadd.f32 0.0, %v834
      %v836 = vpop.f32.mrb[0].mxu0
      %837 = vmatprep.mubr.bf16.mxu0 0
      %838 = vmatmul.mubr.bf16.gmra.mrb[0].mxu0 %v767
      %v839 = vpop.f32.mrb[0].mxu0
      %v840 = vadd.f32 0.0, %v839
      %v841 = vpop.f32.mrb[0].mxu0
      %v842 = vpop.f32.mrb[0].mxu0
      %v843 = vadd.f32 0.0, %v842
      %v844 = vpop.f32.mrb[0].mxu0
      %845 = vmatprep.mubr.bf16.mxu0 0
      %846 = vmatmul.mubr.bf16.gmra.mrb[0].mxu0 %v770
      %v847 = vpop.f32.mrb[0].mxu0
      %v848 = vadd.f32 0.0, %v847
      %v849 = vpop.f32.mrb[0].mxu0
      %v850 = vpop.f32.mrb[0].mxu0
      %v851 = vadd.f32 0.0, %v850
      %v852 = vpop.f32.mrb[0].mxu0
      %853 = vmatprep.mubr.bf16.mxu0 0
      %854 = vmatmul.mubr.bf16.gmra.mrb[0].mxu0 %v773
      %v855 = vpop.f32.mrb[0].mxu0
      %v856 = vadd.f32 0.0, %v855
      %v857 = vpop.f32.mrb[0].mxu0
      %v858 = vpop.f32.mrb[0].mxu0
      %v859 = vadd.f32 0.0, %v858
      %v860 = vpop.f32.mrb[0].mxu0
      %861 = vmatprep.mubr.bf16.mxu0 0
      %862 = vmatmul.mubr.bf16.gmra.mrb[0].mxu0 %v776
      %v863 = vpop.f32.mrb[0].mxu0
      %v864 = vadd.f32 0.0, %v863
      %v865 = vpop.f32.mrb[0].mxu0
      %v866 = vpop.f32.mrb[0].mxu0
      %v867 = vadd.f32 0.0, %v866
      %v868 = vpop.f32.mrb[0].mxu0
      %869 = vmatprep.mubr.bf16.mxu0 0
      %870 = vmatmul.mubr.bf16.gmra.mrb[0].mxu0 %v779
      %v871 = vpop.f32.mrb[0].mxu0
      %v872 = vadd.f32 0.0, %v871
      %v873 = vpop.f32.mrb[0].mxu0
      %v874 = vpop.f32.mrb[0].mxu0
      %v875 = vadd.f32 0.0, %v874
      %v876 = vpop.f32.mrb[0].mxu0
      %877 = vdwg.mxu0
      %v878 = vadd.f32 %v724, %v816
      %v879 = vadd.f32 %v725, %v819
      %v880 = vadd.f32 %v726, %v824
      %v881 = vadd.f32 %v727, %v827
      %v882 = vadd.f32 %v728, %v832
      %v883 = vadd.f32 %v729, %v835
      %v884 = vadd.f32 %v730, %v840
      %v885 = vadd.f32 %v731, %v843
      %v886 = vadd.f32 %v732, %v848
      %v887 = vadd.f32 %v733, %v851
      %v888 = vadd.f32 %v734, %v856
      %v889 = vadd.f32 %v735, %v859
      %v890 = vadd.f32 %v736, %v864
      %v891 = vadd.f32 %v737, %v867
      %v892 = vadd.f32 %v738, %v872
      %v893 = vadd.f32 %v739, %v875
      %894 = vst [vmem:[%s384] sm:$0xff] %v878
      %895 = vst [vmem:[%s384 + $0x8] sm:$0xff] %v879
      %896 = vst [vmem:[%s384 + $0x10] sm:$0xff] %v880
      %897 = vst [vmem:[%s384 + $0x18] sm:$0xff] %v881
      %898 = vst [vmem:[%s384 + $0x20] sm:$0xff] %v882
      %899 = vst [vmem:[%s384 + $0x28] sm:$0xff] %v883
      %900 = vst [vmem:[%s384 + $0x30] sm:$0xff] %v884
      %901 = vst [vmem:[%s384 + $0x38] sm:$0xff] %v885
      %902 = vst [vmem:[%s384 + $0x40] sm:$0xff] %v886
      %903 = vst [vmem:[%s384 + $0x48] sm:$0xff] %v887
      %904 = vst [vmem:[%s384 + $0x50] sm:$0xff] %v888
      %905 = vst [vmem:[%s384 + $0x58] sm:$0xff] %v889
      %906 = vst [vmem:[%s384 + $0x60] sm:$0xff] %v890
      %907 = vst [vmem:[%s384 + $0x68] sm:$0xff] %v891
      %908 = vst [vmem:[%s384 + $0x70] sm:$0xff] %v892
      %909 = vst [vmem:[%s384 + $0x78] sm:$0xff] %v893
      %v910 = vld [vmem:[%s390] sm:$0xff]
      %v911 = vld [vmem:[%s390 + $0x8] sm:$0xff]
      %v912 = vld [vmem:[%s390 + $0x10] sm:$0xff]
      %v913 = vld [vmem:[%s390 + $0x18] sm:$0xff]
      %v914 = vld [vmem:[%s390 + $0x20] sm:$0xff]
      %v915 = vld [vmem:[%s390 + $0x28] sm:$0xff]
      %v916 = vld [vmem:[%s390 + $0x30] sm:$0xff]
      %v917 = vld [vmem:[%s390 + $0x38] sm:$0xff]
      %v918 = vld [vmem:[%s390 + $0x40] sm:$0xff]
      %v919 = vld [vmem:[%s390 + $0x48] sm:$0xff]
      %v920 = vld [vmem:[%s390 + $0x50] sm:$0xff]
      %v921 = vld [vmem:[%s390 + $0x58] sm:$0xff]
      %v922 = vld [vmem:[%s390 + $0x60] sm:$0xff]
      %v923 = vld [vmem:[%s390 + $0x68] sm:$0xff]
      %v924 = vld [vmem:[%s390 + $0x70] sm:$0xff]
      %v925 = vld [vmem:[%s390 + $0x78] sm:$0xff]
      %926 = vmatprep.subr.bf16.mxu0 0
      %927 = vmatpush1.bf16.msra.mxu0 %v439
      %928 = vmatprep.subr.bf16.mxu0 0
      %929 = vmatpush1.bf16.msra.mxu0 0
      %930 = vmatprep.subr.bf16.mxu0 0
      %931 = vmatpush1.bf16.msra.mxu0 0
      %932 = vmatprep.subr.bf16.mxu0 0
      %933 = vmatpush1.bf16.msra.mxu0 0
      %934 = vmatprep.subr.bf16.mxu0 0
      %935 = vmatpush1.bf16.msra.mxu0 0
      %936 = vmatprep.subr.bf16.mxu0 0
      %937 = vmatpush1.bf16.msra.mxu0 0
      %938 = vmatprep.subr.bf16.mxu0 0
      %939 = vmatpush1.bf16.msra.mxu0 0
      %940 = vmatprep.subr.bf16.mxu0 0
      %941 = vmatpush1.bf16.msra.mxu0 0
      %942 = vmatprep.subr.bf16.mxu0 0
      %943 = vmatpush1.bf16.msra.mxu0 0
      %944 = vmatprep.subr.bf16.mxu0 0
      %945 = vmatpush1.bf16.msra.mxu0 0
      %946 = vmatprep.subr.bf16.mxu0 0
      %947 = vmatpush1.bf16.msra.mxu0 0
      %948 = vmatprep.subr.bf16.mxu0 0
      %949 = vmatpush1.bf16.msra.mxu0 0
      %950 = vmatprep.subr.bf16.mxu0 0
      %951 = vmatpush1.bf16.msra.mxu0 0
      %952 = vmatprep.subr.bf16.mxu0 0
      %953 = vmatpush1.bf16.msra.mxu0 0
      %954 = vmatprep.subr.bf16.mxu0 0
      %955 = vmatpush1.bf16.msra.mxu0 0
      %956 = vmatprep.subr.bf16.mxu0 0
      %957 = vmatpush1.bf16.msra.mxu0 0
      %958 = vmatprep.mubr.bf16.mxu0 0
      %959 = vmatmul.mubr.bf16.gmra.mrb[0].mxu0 %v758
      %v960 = vpop.f32.mrb[0].mxu0
      %v961 = vadd.f32 0.0, %v960
      %v962 = vpop.f32.mrb[0].mxu0
      %v963 = vpop.f32.mrb[0].mxu0
      %v964 = vadd.f32 0.0, %v963
      %v965 = vpop.f32.mrb[0].mxu0
      %966 = vmatprep.mubr.bf16.mxu0 0
      %967 = vmatmul.mubr.bf16.gmra.mrb[0].mxu0 %v761
      %v968 = vpop.f32.mrb[0].mxu0
      %v969 = vadd.f32 0.0, %v968
      %v970 = vpop.f32.mrb[0].mxu0
      %v971 = vpop.f32.mrb[0].mxu0
      %v972 = vadd.f32 0.0, %v971
      %v973 = vpop.f32.mrb[0].mxu0
      %974 = vmatprep.mubr.bf16.mxu0 0
      %975 = vmatmul.mubr.bf16.gmra.mrb[0].mxu0 %v764
      %v976 = vpop.f32.mrb[0].mxu0
      %v977 = vadd.f32 0.0, %v976
      %v978 = vpop.f32.mrb[0].mxu0
      %v979 = vpop.f32.mrb[0].mxu0
      %v980 = vadd.f32 0.0, %v979
      %v981 = vpop.f32.mrb[0].mxu0
      %982 = vmatprep.mubr.bf16.mxu0 0
      %983 = vmatmul.mubr.bf16.gmra.mrb[0].mxu0 %v767
      %v984 = vpop.f32.mrb[0].mxu0
      %v985 = vadd.f32 0.0, %v984
      %v986 = vpop.f32.mrb[0].mxu0
      %v987 = vpop.f32.mrb[0].mxu0
      %v988 = vadd.f32 0.0, %v987
      %v989 = vpop.f32.mrb[0].mxu0
      %990 = vmatprep.mubr.bf16.mxu0 0
      %991 = vmatmul.mubr.bf16.gmra.mrb[0].mxu0 %v770
      %v992 = vpop.f32.mrb[0].mxu0
      %v993 = vadd.f32 0.0, %v992
      %v994 = vpop.f32.mrb[0].mxu0
      %v995 = vpop.f32.mrb[0].mxu0
      %v996 = vadd.f32 0.0, %v995
      %v997 = vpop.f32.mrb[0].mxu0
      %998 = vmatprep.mubr.bf16.mxu0 0
      %999 = vmatmul.mubr.bf16.gmra.mrb[0].mxu0 %v773
      %v1000 = vpop.f32.mrb[0].mxu0
      %v1001 = vadd.f32 0.0, %v1000
      %v1002 = vpop.f32.mrb[0].mxu0
      %v1003 = vpop.f32.mrb[0].mxu0
      %v1004 = vadd.f32 0.0, %v1003
      %v1005 = vpop.f32.mrb[0].mxu0
      %1006 = vmatprep.mubr.bf16.mxu0 0
      %1007 = vmatmul.mubr.bf16.gmra.mrb[0].mxu0 %v776
      %v1008 = vpop.f32.mrb[0].mxu0
      %v1009 = vadd.f32 0.0, %v1008
      %v1010 = vpop.f32.mrb[0].mxu0
      %v1011 = vpop.f32.mrb[0].mxu0
      %v1012 = vadd.f32 0.0, %v1011
      %v1013 = vpop.f32.mrb[0].mxu0
      %1014 = vmatprep.mubr.bf16.mxu0 0
      %1015 = vmatmul.mubr.bf16.gmra.mrb[0].mxu0 %v779
      %v1016 = vpop.f32.mrb[0].mxu0
      %v1017 = vadd.f32 0.0, %v1016
      %v1018 = vpop.f32.mrb[0].mxu0
      %v1019 = vpop.f32.mrb[0].mxu0
      %v1020 = vadd.f32 0.0, %v1019
      %v1021 = vpop.f32.mrb[0].mxu0
      %1022 = vdwg.mxu0
      %v1023 = vadd.f32 %v910, %v961
      %v1024 = vadd.f32 %v911, %v964
      %v1025 = vadd.f32 %v912, %v969
      %v1026 = vadd.f32 %v913, %v972
      %v1027 = vadd.f32 %v914, %v977
      %v1028 = vadd.f32 %v915, %v980
      %v1029 = vadd.f32 %v916, %v985
      %v1030 = vadd.f32 %v917, %v988
      %v1031 = vadd.f32 %v918, %v993
      %v1032 = vadd.f32 %v919, %v996
      %v1033 = vadd.f32 %v920, %v1001
      %v1034 = vadd.f32 %v921, %v1004
      %v1035 = vadd.f32 %v922, %v1009
      %v1036 = vadd.f32 %v923, %v1012
      %v1037 = vadd.f32 %v924, %v1017
      %v1038 = vadd.f32 %v925, %v1020
      %1039 = vst [vmem:[%s390] sm:$0xff] %v1023
      %1040 = vst [vmem:[%s390 + $0x8] sm:$0xff] %v1024
      %1041 = vst [vmem:[%s390 + $0x10] sm:$0xff] %v1025
      %1042 = vst [vmem:[%s390 + $0x18] sm:$0xff] %v1026
      %1043 = vst [vmem:[%s390 + $0x20] sm:$0xff] %v1027
      %1044 = vst [vmem:[%s390 + $0x28] sm:$0xff] %v1028
      %1045 = vst [vmem:[%s390 + $0x30] sm:$0xff] %v1029
      %1046 = vst [vmem:[%s390 + $0x38] sm:$0xff] %v1030
      %1047 = vst [vmem:[%s390 + $0x40] sm:$0xff] %v1031
      %1048 = vst [vmem:[%s390 + $0x48] sm:$0xff] %v1032
      %1049 = vst [vmem:[%s390 + $0x50] sm:$0xff] %v1033
      %1050 = vst [vmem:[%s390 + $0x58] sm:$0xff] %v1034
      %1051 = vst [vmem:[%s390 + $0x60] sm:$0xff] %v1035
      %1052 = vst [vmem:[%s390 + $0x68] sm:$0xff] %v1036
      %1053 = vst [vmem:[%s390 + $0x70] sm:$0xff] %v1037
      %1054 = vst [vmem:[%s390 + $0x78] sm:$0xff] %v1038
      %s1055 = smul.u32 16, %s25
      %p1056 = scmp.lt.s32.totalorder %s1055, 15
      %s1057 = scalar_select %p1056, %s1055, 15
      %s1058 = smul.addr %s1057, 8
      %s1059 = scalar_lea.vmem %s6, %s1058
      %s1060 = smul.u32 16, %s25
      %p1061 = scmp.lt.s32.totalorder %s1060, 15
      %s1062 = scalar_select %p1061, %s1060, 15
      %s1063 = smul.addr %s1062, 8
      %s1064 = scalar_lea.vmem %s7, %s1063
      %p1065 = scmp.lt.s32.totalorder %s25, 0
      %s1066 = scalar_select %p1065, %s25, 0
      %s1067 = smul.addr %s1066, 8
      %s1068 = scalar_lea.vmem %s8, %s1067
      // Predicated region
      $region49: #{closed_call.21} parent=43 // pred_check
        %p1069 = pneg %p195
      $region50: #{closed_call.21} parent=43 // pred_check_branch
        %1071 = sbr.rel (%p1069) target = $region52
      $region51: #{closed_call.21} parent=43 // pred_region
        %s1072 = smul.u32 16, %s25
      $region52: #{closed_call.21} parent=43 // pred_fallthru
        _
      // Predicated region
      $region53: #{closed_call.21} parent=43 // pred_check
        %p1073 = pneg %p221
      $region54: #{closed_call.21} parent=43 // pred_check_branch
        %1075 = sbr.rel (%p1073) target = $region56
      $region55: #{closed_call.21} parent=43 // pred_region
        %s1076 = smul.u32 16, %s25
      $region56: #{closed_call.21} parent=43 // pred_fallthru
        _
      // Predicated region
      $region57: #{closed_call.21} parent=43 // pred_check
        %p1077 = pneg %p247
      $region58: #{closed_call.21} parent=43 // pred_check_branch
        %1079 = sbr.rel (%p1077) target = $region60
      $region59: #{closed_call.21} parent=43 // pred_region
        _
      $region60: #{closed_call.21} parent=43 // pred_fallthru
        _
      // Predicated region
      $region61: #{closed_call.21} parent=43 // pred_check
        %p1080 = pneg %p195
      $region62: #{closed_call.21} parent=43 // pred_check_branch
        %1082 = sbr.rel (%p1080) target = $region64
      $region63: #{closed_call.21} parent=43 // pred_region
        %s1083 = smul.u32 16, %s25
        %p1084 = scmp.lt.s32.totalorder %s1083, 15
        %s1085 = scalar_select %p1084, %s1083, 15
        %s1086 = smul.addr %s1085, 8
        %s1087 = scalar_lea.vmem %s6, %s1086
      $region64: #{closed_call.21} parent=43 // pred_fallthru
        _
      // Predicated region
      $region65: #{closed_call.21} parent=43 // pred_check
        %p1088 = pneg %p221
      $region66: #{closed_call.21} parent=43 // pred_check_branch
        %1090 = sbr.rel (%p1088) target = $region68
      $region67: #{closed_call.21} parent=43 // pred_region
        %s1091 = smul.u32 16, %s25
        %p1092 = scmp.lt.s32.totalorder %s1091, 15
        %s1093 = scalar_select %p1092, %s1091, 15
        %s1094 = smul.addr %s1093, 8
        %s1095 = scalar_lea.vmem %s7, %s1094
      $region68: #{closed_call.21} parent=43 // pred_fallthru
        _
      // Predicated region
      $region69: #{closed_call.21} parent=43 // pred_check
        %p1096 = pneg %p247
      $region70: #{closed_call.21} parent=43 // pred_check_branch
        %1098 = sbr.rel (%p1096) target = $region72
      $region71: #{closed_call.21} parent=43 // pred_region
        %p1099 = scmp.lt.s32.totalorder %s25, 0
        %s1100 = scalar_select %p1099, %s25, 0
        %s1101 = smul.addr %s1100, 8
        %s1102 = scalar_lea.vmem %s8, %s1101
      $region72: #{closed_call.21} parent=43 // pred_fallthru
        _
    $region44: #{closed_call.21} parent=5 // pred_fallthru
      _
    %p1103 = scmp.le.s32.totalorder 2, %s16
    // Predicated region
    $region73: #{closed_call.21} parent=5 // pred_check
      %p1104 = pneg %p1103
    $region74: #{closed_call.21} parent=5 // pred_check_branch
      %1106 = sbr.rel (%p1104) target = $region76
    $region75: #{closed_call.21} parent=5 // pred_region
      %s1107 = ssub.s32 %s16, 2
    $region76: #{closed_call.21} parent=5 // pred_fallthru
      _
  $region6: #{closed_call.21} parent=0 // loop_footer
    %s20 = sadd.s32 1, %s16
  $region7: #{closed_call.21} parent=0 // loop_footer_branch
    %15 = sbr.rel target = $region3
  $region8: #{closed_call.21} parent=0 // loop_exit
    _

// kernel: dp_cluster_em_forward.1
$region0: #{dp_cluster_em_forward.1}
  #allocation0 [shape = 'u32[]', space=smem, size = 0x4, offset = 0x4, fixed_abs, tag = 'smem constant byte address 0x4 - core index']
  #allocation1 [shape = 'u32[144,128]{1,0:T(1,128)}', space=vmem, size = 0x12000, scoped, tag = 'internal scratch']
  %s0 = inlined_call_operand.vmem [shape: f32[64,128], index: 0, kind: input, shape index: {}]
  %s1 = inlined_call_operand.vmem [shape: bf16[128,128], index: 1, kind: input, shape index: {}]
  %s2 = inlined_call_operand.vmem [shape: bf16[128,128], index: 2, kind: input, shape index: {}]
  %s3 = inlined_call_operand.vmem [shape: f32[1,128], index: 3, kind: input, shape index: {}]
  %s4 = inlined_call_operand.vmem [shape: f32[64,128], index: 4, kind: input, shape index: {}]
  %s5 = inlined_call_operand.vmem [shape: f32[64,128], index: 5, kind: output, shape index: {}]
  %s6 = sld [smem:[#allocation0]]
  $region53: #{dp_cluster_em_forward.1} parent=0
    _
  %s8 = ssub.s32 1, %s6
  %s9 = scalar_select 0, %s8, %s6
  loop: start=0, step=1, limit=6
  $region2: #{dp_cluster_em_forward.1} parent=0 // loop_pre_header
    _
  $region3: #{dp_cluster_em_forward.1} parent=0 // loop_header
    %s11 = sphi 0, %s15
    %p12 = scmp.ge.s32.totalorder %s11, 6
    %s21 = sphi 0, %s23
    %s24 = sphi 0, %s21
    %s25 = sphi 0, %s24
    %s41 = sphi 0, %s25
    %s45 = sphi 0, %s45
    %s47 = sphi 0, %s45
    %s48 = sphi 0, %s47
    %s62 = sphi 0, %s48
    %s66 = sphi 0, %s66
    %s68 = sphi 0, %s66
    %s69 = sphi 0, %s68
    %s83 = sphi 0, %s69
    %s87 = sphi 0, %s87
    %s89 = sphi 0, %s87
    %s90 = sphi 0, %s89
    %s104 = sphi 0, %s90
    %s110 = sphi 0, %s112
    %s113 = sphi 0, %s110
    %s114 = sphi 0, %s113
    %s130 = sphi 0, %s114
    %s136 = sphi 0, %s138
    %s139 = sphi 0, %s136
    %s140 = sphi 0, %s139
    %s156 = sphi 0, %s140
  $region4: #{dp_cluster_em_forward.1} parent=0 // loop_header_branch
    %14 = sbr.rel (%p12) target = $region8
  $region5: #{dp_cluster_em_forward.1} parent=0 // loop_body
    %s16 = ssub.s32 %s11, 1
    %s17 = ssub.s32 %s11, 2
    %s18 = sadd.s32 %s11, 1
    %s19 = ssub.s32 %s11, %s18
    %p20 = scmp.eq.s32.totalorder %s19, 0
    %s22 = sadd.s32 %s21, 1
    %s23 = scalar_select %p20, %s21, %s22
    %p26 = pneg %p20
    %p27 = scmp.eq.s32.totalorder %s11, 3
    %p28 = por %p26, %p27
    %p29 = scmp.ne.s32.totalorder %s21, %s24
    %p30 = scmp.eq.s32.totalorder %s11, 0
    %p31 = por %p29, %p30
    %p32 = scmp.ne.s32.totalorder %s21, %s24
    %p33 = scmp.eq.s32.totalorder %s16, 3
    %p34 = por %p32, %p33
    %p35 = scmp.ne.s32.totalorder %s24, %s25
    %p36 = scmp.eq.s32.totalorder %s16, 0
    %p37 = por %p35, %p36
    %p38 = scmp.ne.s32.totalorder %s24, %s25
    %p39 = scmp.eq.s32.totalorder %s17, 3
    %p40 = por %p38, %p39
    %p42 = scmp.ne.s32.totalorder %s25, %s41
    %p43 = scmp.eq.s32.totalorder %s17, 0
    %p44 = por %p42, %p43
    %s46 = sadd.s32 %s45, 1
    %p49 = scmp.eq.s32.totalorder %s11, 3
    %p50 = scmp.ne.s32.totalorder %s45, %s47
    %p51 = scmp.eq.s32.totalorder %s11, 0
    %p52 = por %p50, %p51
    %p53 = scmp.ne.s32.totalorder %s45, %s47
    %p54 = scmp.eq.s32.totalorder %s16, 3
    %p55 = por %p53, %p54
    %p56 = scmp.ne.s32.totalorder %s47, %s48
    %p57 = scmp.eq.s32.totalorder %s16, 0
    %p58 = por %p56, %p57
    %p59 = scmp.ne.s32.totalorder %s47, %s48
    %p60 = scmp.eq.s32.totalorder %s17, 3
    %p61 = por %p59, %p60
    %p63 = scmp.ne.s32.totalorder %s48, %s62
    %p64 = scmp.eq.s32.totalorder %s17, 0
    %p65 = por %p63, %p64
    %s67 = sadd.s32 %s66, 1
    %p70 = scmp.eq.s32.totalorder %s11, 3
    %p71 = scmp.ne.s32.totalorder %s66, %s68
    %p72 = scmp.eq.s32.totalorder %s11, 0
    %p73 = por %p71, %p72
    %p74 = scmp.ne.s32.totalorder %s66, %s68
    %p75 = scmp.eq.s32.totalorder %s16, 3
    %p76 = por %p74, %p75
    %p77 = scmp.ne.s32.totalorder %s68, %s69
    %p78 = scmp.eq.s32.totalorder %s16, 0
    %p79 = por %p77, %p78
    %p80 = scmp.ne.s32.totalorder %s68, %s69
    %p81 = scmp.eq.s32.totalorder %s17, 3
    %p82 = por %p80, %p81
    %p84 = scmp.ne.s32.totalorder %s69, %s83
    %p85 = scmp.eq.s32.totalorder %s17, 0
    %p86 = por %p84, %p85
    %s88 = sadd.s32 %s87, 1
    %p91 = scmp.eq.s32.totalorder %s11, 3
    %p92 = scmp.ne.s32.totalorder %s87, %s89
    %p93 = scmp.eq.s32.totalorder %s11, 0
    %p94 = por %p92, %p93
    %p95 = scmp.ne.s32.totalorder %s87, %s89
    %p96 = scmp.eq.s32.totalorder %s16, 3
    %p97 = por %p95, %p96
    %p98 = scmp.ne.s32.totalorder %s89, %s90
    %p99 = scmp.eq.s32.totalorder %s16, 0
    %p100 = por %p98, %p99
    %p101 = scmp.ne.s32.totalorder %s89, %s90
    %p102 = scmp.eq.s32.totalorder %s17, 3
    %p103 = por %p101, %p102
    %p105 = scmp.ne.s32.totalorder %s90, %s104
    %p106 = scmp.eq.s32.totalorder %s17, 0
    %p107 = por %p105, %p106
    %s108 = ssub.s32 %s11, %s18
    %p109 = scmp.eq.s32.totalorder %s108, 0
    %s111 = sadd.s32 %s110, 1
    %s112 = scalar_select %p109, %s110, %s111
    %p115 = pneg %p109
    %p116 = scmp.eq.s32.totalorder %s11, 3
    %p117 = por %p115, %p116
    %p118 = scmp.ne.s32.totalorder %s110, %s113
    %p119 = scmp.eq.s32.totalorder %s11, 0
    %p120 = por %p118, %p119
    %p121 = scmp.ne.s32.totalorder %s110, %s113
    %p122 = scmp.eq.s32.totalorder %s16, 3
    %p123 = por %p121, %p122
    %p124 = scmp.ne.s32.totalorder %s113, %s114
    %p125 = scmp.eq.s32.totalorder %s16, 0
    %p126 = por %p124, %p125
    %p127 = scmp.ne.s32.totalorder %s113, %s114
    %p128 = scmp.eq.s32.totalorder %s17, 3
    %p129 = por %p127, %p128
    %p131 = scmp.ne.s32.totalorder %s114, %s130
    %p132 = scmp.eq.s32.totalorder %s17, 0
    %p133 = por %p131, %p132
    %s134 = ssub.s32 %s11, %s18
    %p135 = scmp.eq.s32.totalorder %s134, 0
    %s137 = sadd.s32 %s136, 1
    %s138 = scalar_select %p135, %s136, %s137
    %p141 = pneg %p135
    %p142 = scmp.eq.s32.totalorder %s11, 3
    %p143 = por %p141, %p142
    %p144 = scmp.ne.s32.totalorder %s136, %s139
    %p145 = scmp.eq.s32.totalorder %s11, 0
    %p146 = por %p144, %p145
    %p147 = scmp.ne.s32.totalorder %s136, %s139
    %p148 = scmp.eq.s32.totalorder %s16, 3
    %p149 = por %p147, %p148
    %p150 = scmp.ne.s32.totalorder %s139, %s140
    %p151 = scmp.eq.s32.totalorder %s16, 0
    %p152 = por %p150, %p151
    %p153 = scmp.ne.s32.totalorder %s139, %s140
    %p154 = scmp.eq.s32.totalorder %s17, 3
    %p155 = por %p153, %p154
    %p157 = scmp.ne.s32.totalorder %s140, %s156
    %p158 = scmp.eq.s32.totalorder %s17, 0
    %p159 = por %p157, %p158
    %p160 = scmp.le.s32.totalorder 1, %s11
    %p161 = scmp.lt.s32.totalorder %s11, 5
    %p162 = pnand %p160, %p161
    %p163 = pneg %p162
    // Predicated region
    $region9: #{dp_cluster_em_forward.1} parent=5 // pred_check
      _
    $region10: #{dp_cluster_em_forward.1} parent=5 // pred_check_branch
      %165 = sbr.rel (%p162) target = $region12
    $region11: #{dp_cluster_em_forward.1} parent=5 // pred_region
      %s166 = ssub.s32 %s11, 1
      // Predicated region
      $region13: #{dp_cluster_em_forward.1} parent=11 // pred_check
        %p167 = pneg %p58
      $region14: #{dp_cluster_em_forward.1} parent=11 // pred_check_branch
        %169 = sbr.rel (%p167) target = $region16
      $region15: #{dp_cluster_em_forward.1} parent=11 // pred_region
        _
      $region16: #{dp_cluster_em_forward.1} parent=11 // pred_fallthru
        _
      // Predicated region
      $region17: #{dp_cluster_em_forward.1} parent=11 // pred_check
        %p170 = pneg %p79
      $region18: #{dp_cluster_em_forward.1} parent=11 // pred_check_branch
        %172 = sbr.rel (%p170) target = $region20
      $region19: #{dp_cluster_em_forward.1} parent=11 // pred_region
        _
      $region20: #{dp_cluster_em_forward.1} parent=11 // pred_fallthru
        _
      // Predicated region
      $region21: #{dp_cluster_em_forward.1} parent=11 // pred_check
        %p173 = pneg %p100
      $region22: #{dp_cluster_em_forward.1} parent=11 // pred_check_branch
        %175 = sbr.rel (%p173) target = $region24
      $region23: #{dp_cluster_em_forward.1} parent=11 // pred_region
        _
      $region24: #{dp_cluster_em_forward.1} parent=11 // pred_fallthru
        _
    $region12: #{dp_cluster_em_forward.1} parent=5 // pred_fallthru
      _
    %p176 = scmp.lt.s32.totalorder %s11, 4
    // Predicated region
    $region25: #{dp_cluster_em_forward.1} parent=5 // pred_check
      %p177 = pneg %p176
    $region26: #{dp_cluster_em_forward.1} parent=5 // pred_check_branch
      %179 = sbr.rel (%p177) target = $region28
    $region27: #{dp_cluster_em_forward.1} parent=5 // pred_region
      // Predicated region
      $region29: #{dp_cluster_em_forward.1} parent=27 // pred_check
        %p180 = pneg %p31
      $region30: #{dp_cluster_em_forward.1} parent=27 // pred_check_branch
        %182 = sbr.rel (%p180) target = $region32
      $region31: #{dp_cluster_em_forward.1} parent=27 // pred_region
        %s183 = smul.u32 2, %s11
        %p184 = scmp.lt.s32.totalorder %s183, 7
        %s185 = scalar_select %p184, %s183, 7
        %s186 = smul.addr %s185, 8
        %s187 = scalar_lea.vmem %s0, %s186
        %s188 = smul.u32 2, %s11
      $region32: #{dp_cluster_em_forward.1} parent=27 // pred_fallthru
        _
      // Predicated region
      $region33: #{dp_cluster_em_forward.1} parent=27 // pred_check
        %p189 = pneg %p120
      $region34: #{dp_cluster_em_forward.1} parent=27 // pred_check_branch
        %191 = sbr.rel (%p189) target = $region36
      $region35: #{dp_cluster_em_forward.1} parent=27 // pred_region
        %s192 = smul.u32 2, %s11
        %p193 = scmp.lt.s32.totalorder %s192, 7
        %s194 = scalar_select %p193, %s192, 7
        %s195 = smul.addr %s194, 8
        %s196 = scalar_lea.vmem %s4, %s195
        %s197 = smul.u32 2, %s11
      $region36: #{dp_cluster_em_forward.1} parent=27 // pred_fallthru
        _
    $region28: #{dp_cluster_em_forward.1} parent=5 // pred_fallthru
      _
    %p198 = scmp.le.s32.totalorder 1, %s11
    %p199 = scmp.lt.s32.totalorder %s11, 5
    %p200 = pnand %p198, %p199
    %p201 = pneg %p200
    // Predicated region
    $region37: #{dp_cluster_em_forward.1} parent=5 // pred_check
      _
    $region38: #{dp_cluster_em_forward.1} parent=5 // pred_check_branch
      %203 = sbr.rel (%p200) target = $region40
    $region39: #{dp_cluster_em_forward.1} parent=5 // pred_region
      %s204 = ssub.s32 %s11, 1
      %s205 = smul.u32 2, %s16
      %p206 = scmp.lt.s32.totalorder %s205, 7
      %s207 = scalar_select %p206, %s205, 7
      %s208 = smul.addr %s207, 8
      %s209 = scalar_lea.vmem %s0, %s208
      %p210 = pneg %p37
      %p211 = pneg %p34
      %p212 = pneg %p58
      %p213 = pneg %p55
      %p214 = pneg %p79
      %p215 = pneg %p76
      %p216 = pneg %p100
      %p217 = pneg %p97
      %s218 = smul.u32 2, %s16
      %p219 = scmp.lt.s32.totalorder %s218, 7
      %s220 = scalar_select %p219, %s218, 7
      %s221 = smul.addr %s220, 8
      %s222 = scalar_lea.vmem %s4, %s221
      %p223 = pneg %p126
      %p224 = pneg %p123
      %p225 = pneg %p152
      %p226 = pneg %p149
      %s227 = smul.u32 2, %s16
      %p228 = scmp.lt.s32.totalorder %s227, 7
      %s229 = scalar_select %p228, %s227, 7
      %s230 = smul.addr %s229, 8
      %s231 = scalar_lea.vmem %s5, %s230
      %s232 = smul.u32 2, %s16
      %p233 = scmp.lt.s32.totalorder %s232, 7
      %s234 = scalar_select %p233, %s232, 7
      %s235 = smul.addr %s234, 8
      %s236 = scalar_lea.vmem %s0, %s235
      %s237 = smul.u32 2, %s16
      %s238 = smul.u32 2, %s16
      %p239 = scmp.lt.s32.totalorder %s238, 7
      %s240 = scalar_select %p239, %s238, 7
      %s241 = smul.addr %s240, 8
      %s242 = scalar_lea.vmem %s4, %s241
      %s243 = smul.u32 2, %s16
      %s244 = smul.u32 2, %s16
      %p245 = scmp.lt.s32.totalorder %s244, 7
      %s246 = scalar_select %p245, %s244, 7
      %s247 = smul.addr %s246, 8
      %s248 = scalar_lea.vmem %s5, %s247
      %s249 = smul.u32 2, %s16
      %v251 = vld [vmem:[%s236] sm:$0xff]
      %v252 = vld [vmem:[%s236 + $0x8] sm:$0xff]
      %v253 = vmul.f32 %v251, %v251
      %v254 = vmul.f32 %v252, %v252
      %v255 = vpack.c.bf16 %v254, %v253
      %v256 = vpack.c.bf16 %v252, %v251
      %v257 = vld [vmem:[%s242] sm:$0xff]
      %v258 = vld [vmem:[%s242 + $0x8] sm:$0xff]
      %v259 = vld [vmem:[%s1] sm:$0xf]
      %v260 = vld [vmem:[%s1 + $0x4] sm:$0xf]
      %v261 = vld [vmem:[%s1 + $0x8] sm:$0xf]
      %v262 = vld [vmem:[%s1 + $0xc] sm:$0xf]
      %v263 = vld [vmem:[%s1 + $0x10] sm:$0xf]
      %v264 = vld [vmem:[%s1 + $0x14] sm:$0xf]
      %v265 = vld [vmem:[%s1 + $0x18] sm:$0xf]
      %v266 = vld [vmem:[%s1 + $0x1c] sm:$0xf]
      %v267 = vld [vmem:[%s1 + $0x20] sm:$0xf]
      %v268 = vld [vmem:[%s1 + $0x24] sm:$0xf]
      %v269 = vld [vmem:[%s1 + $0x28] sm:$0xf]
      %v270 = vld [vmem:[%s1 + $0x2c] sm:$0xf]
      %v271 = vld [vmem:[%s1 + $0x30] sm:$0xf]
      %v272 = vld [vmem:[%s1 + $0x34] sm:$0xf]
      %v273 = vld [vmem:[%s1 + $0x38] sm:$0xf]
      %v274 = vld [vmem:[%s1 + $0x3c] sm:$0xf]
      %v275 = vld [vmem:[%s2] sm:$0xf]
      %v276 = vld [vmem:[%s2 + $0x4] sm:$0xf]
      %v277 = vld [vmem:[%s2 + $0x8] sm:$0xf]
      %v278 = vld [vmem:[%s2 + $0xc] sm:$0xf]
      %v279 = vld [vmem:[%s2 + $0x10] sm:$0xf]
      %v280 = vld [vmem:[%s2 + $0x14] sm:$0xf]
      %v281 = vld [vmem:[%s2 + $0x18] sm:$0xf]
      %v282 = vld [vmem:[%s2 + $0x1c] sm:$0xf]
      %v283 = vld [vmem:[%s2 + $0x20] sm:$0xf]
      %v284 = vld [vmem:[%s2 + $0x24] sm:$0xf]
      %v285 = vld [vmem:[%s2 + $0x28] sm:$0xf]
      %v286 = vld [vmem:[%s2 + $0x2c] sm:$0xf]
      %v287 = vld [vmem:[%s2 + $0x30] sm:$0xf]
      %v288 = vld [vmem:[%s2 + $0x34] sm:$0xf]
      %v289 = vld [vmem:[%s2 + $0x38] sm:$0xf]
      %v290 = vld [vmem:[%s2 + $0x3c] sm:$0xf]
      %v307 = vunpack.c.l.b16 %v275
      %v308 = vunpack.c.l.b16 %v276
      %v309 = vunpack.c.l.b16 %v277
      %v310 = vunpack.c.l.b16 %v278
      %v311 = vunpack.c.l.b16 %v279
      %v312 = vunpack.c.l.b16 %v280
      %v313 = vunpack.c.l.b16 %v281
      %v314 = vunpack.c.l.b16 %v282
      %v315 = vunpack.c.l.b16 %v283
      %v316 = vunpack.c.l.b16 %v284
      %v317 = vunpack.c.l.b16 %v285
      %v318 = vunpack.c.l.b16 %v286
      %v319 = vunpack.c.l.b16 %v287
      %v320 = vunpack.c.l.b16 %v288
      %v321 = vunpack.c.l.b16 %v289
      %v322 = vunpack.c.l.b16 %v290
      %v323 = vpack.c.b16 %v308, %v307
      %v324 = vpack.c.b16 %v310, %v309
      %v325 = vpack.c.b16 %v312, %v311
      %v326 = vpack.c.b16 %v314, %v313
      %v327 = vpack.c.b16 %v316, %v315
      %v328 = vpack.c.b16 %v318, %v317
      %v329 = vpack.c.b16 %v320, %v319
      %v330 = vpack.c.b16 %v322, %v321
      %339 = vmatprep.subr.bf16.mxu0 0
      %340 = vmatpush1.bf16.msra.mxu0 %v323
      %341 = vmatprep.subr.bf16.mxu0 0
      %342 = vmatpush1.bf16.msra.mxu0 %v324
      %343 = vmatprep.subr.bf16.mxu0 0
      %344 = vmatpush1.bf16.msra.mxu0 %v325
      %345 = vmatprep.subr.bf16.mxu0 0
      %346 = vmatpush1.bf16.msra.mxu0 %v326
      %347 = vmatprep.subr.bf16.mxu0 0
      %348 = vmatpush1.bf16.msra.mxu0 %v327
      %349 = vmatprep.subr.bf16.mxu0 0
      %350 = vmatpush1.bf16.msra.mxu0 %v328
      %351 = vmatprep.subr.bf16.mxu0 0
      %352 = vmatpush1.bf16.msra.mxu0 %v329
      %353 = vmatprep.subr.bf16.mxu0 0
      %354 = vmatpush1.bf16.msra.mxu0 %v330
      %355 = vmatprep.subr.bf16.mxu0 0
      %356 = vmatpush1.bf16.msra.mxu0 0
      %357 = vmatprep.subr.bf16.mxu0 0
      %358 = vmatpush1.bf16.msra.mxu0 0
      %359 = vmatprep.subr.bf16.mxu0 0
      %360 = vmatpush1.bf16.msra.mxu0 0
      %361 = vmatprep.subr.bf16.mxu0 0
      %362 = vmatpush1.bf16.msra.mxu0 0
      %363 = vmatprep.subr.bf16.mxu0 0
      %364 = vmatpush1.bf16.msra.mxu0 0
      %365 = vmatprep.subr.bf16.mxu0 0
      %366 = vmatpush1.bf16.msra.mxu0 0
      %367 = vmatprep.subr.bf16.mxu0 0
      %368 = vmatpush1.bf16.msra.mxu0 0
      %369 = vmatprep.subr.bf16.mxu0 0
      %370 = vmatpush1.bf16.msra.mxu0 0
      %371 = vmatprep.mubr.bf16.mxu0 0
      %372 = vmatmul.mubr.bf16.gmra.mrb[0].mxu0 %v256
      %v373 = vpop.f32.mrb[0].mxu0
      %v374 = vadd.f32 0.0, %v373
      %v375 = vpop.f32.mrb[0].mxu0
      %v376 = vpop.f32.mrb[0].mxu0
      %v377 = vadd.f32 0.0, %v376
      %v378 = vpop.f32.mrb[0].mxu0
      %379 = vdwg.mxu0
      %v396 = vunpack.c.l.b16 %v259
      %v397 = vunpack.c.l.b16 %v260
      %v398 = vunpack.c.l.b16 %v261
      %v399 = vunpack.c.l.b16 %v262
      %v400 = vunpack.c.l.b16 %v263
      %v401 = vunpack.c.l.b16 %v264
      %v402 = vunpack.c.l.b16 %v265
      %v403 = vunpack.c.l.b16 %v266
      %v404 = vunpack.c.l.b16 %v267
      %v405 = vunpack.c.l.b16 %v268
      %v406 = vunpack.c.l.b16 %v269
      %v407 = vunpack.c.l.b16 %v270
      %v408 = vunpack.c.l.b16 %v271
      %v409 = vunpack.c.l.b16 %v272
      %v410 = vunpack.c.l.b16 %v273
      %v411 = vunpack.c.l.b16 %v274
      %v412 = vpack.c.b16 %v397, %v396
      %v413 = vpack.c.b16 %v399, %v398
      %v414 = vpack.c.b16 %v401, %v400
      %v415 = vpack.c.b16 %v403, %v402
      %v416 = vpack.c.b16 %v405, %v404
      %v417 = vpack.c.b16 %v407, %v406
      %v418 = vpack.c.b16 %v409, %v408
      %v419 = vpack.c.b16 %v411, %v410
      %428 = vmatprep.subr.bf16.mxu0 0
      %429 = vmatpush1.bf16.msra.mxu0 %v412
      %430 = vmatprep.subr.bf16.mxu0 0
      %431 = vmatpush1.bf16.msra.mxu0 %v413
      %432 = vmatprep.subr.bf16.mxu0 0
      %433 = vmatpush1.bf16.msra.mxu0 %v414
      %434 = vmatprep.subr.bf16.mxu0 0
      %435 = vmatpush1.bf16.msra.mxu0 %v415
      %436 = vmatprep.subr.bf16.mxu0 0
      %437 = vmatpush1.bf16.msra.mxu0 %v416
      %438 = vmatprep.subr.bf16.mxu0 0
      %439 = vmatpush1.bf16.msra.mxu0 %v417
      %440 = vmatprep.subr.bf16.mxu0 0
      %441 = vmatpush1.bf16.msra.mxu0 %v418
      %442 = vmatprep.subr.bf16.mxu0 0
      %443 = vmatpush1.bf16.msra.mxu0 %v419
      %444 = vmatprep.subr.bf16.mxu0 0
      %445 = vmatpush1.bf16.msra.mxu0 0
      %446 = vmatprep.subr.bf16.mxu0 0
      %447 = vmatpush1.bf16.msra.mxu0 0
      %448 = vmatprep.subr.bf16.mxu0 0
      %449 = vmatpush1.bf16.msra.mxu0 0
      %450 = vmatprep.subr.bf16.mxu0 0
      %451 = vmatpush1.bf16.msra.mxu0 0
      %452 = vmatprep.subr.bf16.mxu0 0
      %453 = vmatpush1.bf16.msra.mxu0 0
      %454 = vmatprep.subr.bf16.mxu0 0
      %455 = vmatpush1.bf16.msra.mxu0 0
      %456 = vmatprep.subr.bf16.mxu0 0
      %457 = vmatpush1.bf16.msra.mxu0 0
      %458 = vmatprep.subr.bf16.mxu0 0
      %459 = vmatpush1.bf16.msra.mxu0 0
      %460 = vmatprep.mubr.bf16.mxu0 0
      %461 = vmatmul.mubr.bf16.gmra.mrb[0].mxu0 %v255
      %v462 = vpop.f32.mrb[0].mxu0
      %v463 = vadd.f32 %v374, %v462
      %v464 = vpop.f32.mrb[0].mxu0
      %v465 = vpop.f32.mrb[0].mxu0
      %v466 = vadd.f32 %v377, %v465
      %v467 = vpop.f32.mrb[0].mxu0
      %468 = vdwg.mxu0
      %v469 = vld [vmem:[%s3] sm:$0x1]
      %v471 = vlaneseq
      %v472 = vshrl.u32 %v471, 7
      %v473 = vsub.s32 0, %v472
      %v474 = vrot.slane %v469, %v473
      %v476 = vadd.f32 %v474, %v463
      %v477 = vadd.f32 %v474, %v466
      %v478 = vadd.f32 %v257, %v476
      %v479 = vadd.f32 %v258, %v477
      %v480 = vlaneseq
      %v481 = vand.u32 %v480, 127
      %vm482 = vcmp.lt.s32.totalorder %v481, 8
      %v483 = vsel %vm482, 1, 0
      %vm484 = vcmp.eq.s32.totalorder %v483, 1
      %v485 = vsel %vm484, %v478, -1e+30
      %v486 = vsel %vm484, %v479, -1e+30
      %487 = vmax.xlane.f32.xlu0 %v485
      %v488 = vpop.xlane.xlu0 %487
      %489 = vmax.xlane.f32.xlu0 %v486
      %v490 = vpop.xlane.xlu0 %489
      %v491 = vsub.f32 %v485, %v488
      %v492 = vsub.f32 %v486, %v490
      %v493 = vmul.f32 %v491, 1.442695
      %v494 = vpow.pop %v493
      %v495 = vmul.f32 %v492, 1.442695
      %v496 = vpow.pop %v495
      %497 = vadd.xlane.f32.xlu0 %v494
      %v498 = vpop.xlane.xlu0 %497
      %499 = vadd.xlane.f32.xlu0 %v496
      %v500 = vpop.xlane.xlu0 %499
      %v501 = vrcp.pop %v498
      %v502 = vmul.f32 %v494, %v501
      %v503 = vrcp.pop %v500
      %v504 = vmul.f32 %v496, %v503
      %505 = vst [vmem:[%s248] sm:$0xff] %v502
      %506 = vst [vmem:[%s248 + $0x8] sm:$0xff] %v504
      %s507 = smul.u32 2, %s16
      %p508 = scmp.lt.s32.totalorder %s507, 7
      %s509 = scalar_select %p508, %s507, 7
      %s510 = smul.addr %s509, 8
      %s511 = scalar_lea.vmem %s5, %s510
      // Predicated region
      $region41: #{dp_cluster_em_forward.1} parent=39 // pred_check
        %p512 = pneg %p149
      $region42: #{dp_cluster_em_forward.1} parent=39 // pred_check_branch
        %514 = sbr.rel (%p512) target = $region44
      $region43: #{dp_cluster_em_forward.1} parent=39 // pred_region
        %s515 = smul.u32 2, %s16
      $region44: #{dp_cluster_em_forward.1} parent=39 // pred_fallthru
        _
    $region40: #{dp_cluster_em_forward.1} parent=5 // pred_fallthru
      _
    %p516 = scmp.le.s32.totalorder 2, %s11
    // Predicated region
    $region45: #{dp_cluster_em_forward.1} parent=5 // pred_check
      %p517 = pneg %p516
    $region46: #{dp_cluster_em_forward.1} parent=5 // pred_check_branch
      %519 = sbr.rel (%p517) target = $region48
    $region47: #{dp_cluster_em_forward.1} parent=5 // pred_region
      %s520 = ssub.s32 %s11, 2
      // Predicated region
      $region49: #{dp_cluster_em_forward.1} parent=47 // pred_check
        %p521 = pneg %p155
      $region50: #{dp_cluster_em_forward.1} parent=47 // pred_check_branch
        %523 = sbr.rel (%p521) target = $region52
      $region51: #{dp_cluster_em_forward.1} parent=47 // pred_region
        %s524 = smul.u32 2, %s17
        %p525 = scmp.lt.s32.totalorder %s524, 7
        %s526 = scalar_select %p525, %s524, 7
        %s527 = smul.addr %s526, 8
        %s528 = scalar_lea.vmem %s5, %s527
      $region52: #{dp_cluster_em_forward.1} parent=47 // pred_fallthru
        _
    $region48: #{dp_cluster_em_forward.1} parent=5 // pred_fallthru
      _
  $region6: #{dp_cluster_em_forward.1} parent=0 // loop_footer
    %s15 = sadd.s32 1, %s11
  $region7: #{dp_cluster_em_forward.1} parent=0 // loop_footer_branch
    %10 = sbr.rel target = $region3
  $region8: #{dp_cluster_em_forward.1} parent=0 // loop_exit
    _

</llo_original>
